<compile_context>
chip_gen: v5e
topology: v5e:2x2
jax: 0.10.0
libtpu: 0.0.40
codegen_flags: <defaults>
</compile_context>

<pallas_src>
import jax
import jax.numpy as jnp
from jax.experimental import pallas as pl
from jax.experimental.pallas import tpu as pltpu


def _round_up(x, m):
    return ((x + m - 1) // m) * m


def _vmem_capacity_bytes():
    try:
        return int(pltpu.get_tpu_info().vmem_capacity_bytes)
    except Exception:
        return 64 * 1024 * 1024


def _device_kind():
    try:
        return jax.devices()[0].device_kind.lower()
    except Exception:
        return ""


def _select_tiles(out_itemsize):
    """Per-generation (tm, th, vmem_limit_bytes)."""
    vmem_cap = _vmem_capacity_bytes()
    kind = _device_kind()
    if "v5" in kind:
        # v5e: tm=256 already sits at the HBM roofline; MXU is 4x128x128.
        return 256, 512, min(vmem_cap, 64 * 1024 * 1024)
    if vmem_cap >= 100 * 1024 * 1024:
        # v6e-class (128 MiB VMEM): grow arithmetic intensity (flops/weight-byte = tm).
        return 512, 1024, 96 * 1024 * 1024
    # v7x-class (64 MiB VMEM): keep the working set small; wide row tiles
    # only when the output tile is bf16.
    return (512 if out_itemsize <= 2 else 256), 512, 48 * 1024 * 1024


def _pick_th(Hp, th_target):
    """Largest multiple of 128 that divides Hp and is <= th_target."""
    units = Hp // 128
    for d in range(min(max(th_target // 128, 1), units), 0, -1):
        if units % d == 0:
            return d * 128
    return 128


# ----------------------------- kernels --------------------------------------


def ffn_resident_kernel(x_ref, w1_ref, b1_ref, w2_ref, b2_ref, o_ref):
    # Full W1/W2 resident in VMEM (constant index maps): whole FFN per row tile.
    h = jnp.dot(x_ref[...], w1_ref[...], preferred_element_type=jnp.float32)
    h = jnp.maximum(h + b1_ref[...], 0.0)
    out = jnp.dot(h.astype(w2_ref.dtype), w2_ref[...],
                  preferred_element_type=jnp.float32)
    o_ref[...] = (out + b2_ref[...]).astype(o_ref.dtype)


def ffn_tiled_kernel(x_ref, w1_ref, b1_ref, w2_ref, b2_ref, o_ref, acc_ref):
    # Hidden dim tiled along grid axis 1; f32 accumulator resident over k.
    k = pl.program_id(1)

    h = jnp.dot(x_ref[...], w1_ref[...], preferred_element_type=jnp.float32)
    h = jnp.maximum(h + b1_ref[...], 0.0)
    part = jnp.dot(h.astype(w2_ref.dtype), w2_ref[...],
                   preferred_element_type=jnp.float32)

    @pl.when(k == 0)
    def _():
        acc_ref[...] = part          # direct assign: no zero-init store + RMW

    @pl.when(k > 0)
    def _():
        acc_ref[...] += part

    @pl.when(k == pl.num_programs(1) - 1)
    def _():
        o_ref[...] = (acc_ref[...] + b2_ref[...]).astype(o_ref.dtype)


# ----------------------------- host wrappers --------------------------------


def prepare_params(w1, b1, w2, b2, *, compute_dtype=jnp.bfloat16):
    """Pad to 128-aligned tiles and cast weights to the MXU dtype ONCE.

    Weights are stored as (in_features, out_features) == PyTorch weight.T.
    Do this at init (outside the per-call hot path).
    """
    E, H = w1.shape
    assert w2.shape == (H, E) and b1.shape == (H,) and b2.shape == (E,)
    Ep = _round_up(E, 128)
    Hp = _round_up(H, 128)
    w1p = jnp.pad(w1, ((0, Ep - E), (0, Hp - H))).astype(compute_dtype)
    w2p = jnp.pad(w2, ((0, Hp - H), (0, Ep - E))).astype(compute_dtype)
    b1p = jnp.pad(b1, (0, Hp - H)).reshape(1, Hp).astype(jnp.float32)
    b2p = jnp.pad(b2, (0, Ep - E)).reshape(1, Ep).astype(jnp.float32)
    return dict(w1=w1p, b1=b1p, w2=w2p, b2=b2p,
                E=E, H=H, Ep=Ep, Hp=Hp, compute_dtype=compute_dtype)


def feed_forward_apply(x, params, *, tm=None, th=None, out_dtype=None,
                       vmem_limit_bytes=None, force_tiled=False):
    """x: (B, T, E) -> (B, T, E).  Dropout is identity (inference mode)."""
    B, T, E = x.shape
    assert E == params["E"]
    Ep, Hp = params["Ep"], params["Hp"]
    compute_dtype = params["compute_dtype"]
    out_dtype = x.dtype if out_dtype is None else out_dtype
    out_itemsize = jnp.dtype(out_dtype).itemsize
    c_itemsize = jnp.dtype(compute_dtype).itemsize

    tm_sel, th_sel, vmem_sel = _select_tiles(out_itemsize)
    tm = tm_sel if tm is None else tm
    th = th_sel if th is None else th
    vmem_limit_bytes = vmem_sel if vmem_limit_bytes is None else vmem_limit_bytes

    M = B * T
    tm_eff = min(tm, _round_up(M, 128))
    # v7x megacore: guarantee >= 2 row tiles so both TensorCores get work.
    if M >= 512:
        tm_eff = min(tm_eff, _round_up((M + 1) // 2, 256))
    Mp = _round_up(M, tm_eff)
    n_row_tiles = Mp // tm_eff

    # Only the activations are padded/cast per call (cheap vs. the weights).
    x2 = jnp.pad(x.reshape(M, E),
                 ((0, Mp - M), (0, Ep - E))).astype(compute_dtype)

    w1p, b1p, w2p, b2p = params["w1"], params["b1"], params["w2"], params["b2"]
    weight_bytes = (w1p.size + w2p.size) * c_itemsize
    bias_bytes = (b1p.size + b2p.size) * 4
    # Conservative VMEM budget: 2x weights (buffering), double-buffered x/out
    # tiles, plus the f32 hidden activation of one row tile.
    io_tile_bytes = 2 * tm_eff * Ep * (c_itemsize + out_itemsize)
    resident_bytes = (2 * weight_bytes + bias_bytes + io_tile_bytes
                      + tm_eff * Hp * 4)
    resident = (not force_tiled) and resident_bytes <= int(vmem_limit_bytes * 0.9)

    flops = 4 * Mp * Ep * Hp  # two matmuls, 2*M*E*H flops each

    if resident:
        bytes_accessed = (x2.size * c_itemsize + weight_bytes + bias_bytes
                          + Mp * Ep * out_itemsize)
        out2 = pl.pallas_call(
            ffn_resident_kernel,
            out_shape=jax.ShapeDtypeStruct((Mp, Ep), out_dtype),
            grid_spec=pltpu.PrefetchScalarGridSpec(
                num_scalar_prefetch=0,
                grid=(n_row_tiles,),
                in_specs=[
                    pl.BlockSpec((tm_eff, Ep), lambda i: (i, 0)),   # x rows
                    pl.BlockSpec((Ep, Hp), lambda i: (0, 0)),       # W1 (resident)
                    pl.BlockSpec((1, Hp), lambda i: (0, 0)),        # b1
                    pl.BlockSpec((Hp, Ep), lambda i: (0, 0)),       # W2 (resident)
                    pl.BlockSpec((1, Ep), lambda i: (0, 0)),        # b2
                ],
                out_specs=pl.BlockSpec((tm_eff, Ep), lambda i: (i, 0)),
            ),
            compiler_params=pltpu.CompilerParams(
                dimension_semantics=("parallel",),
                vmem_limit_bytes=vmem_limit_bytes,
            ),
            cost_estimate=pl.CostEstimate(
                flops=flops, transcendentals=0, bytes_accessed=bytes_accessed),
        )(x2, w1p, b1p, w2p, b2p)
    else:
        th_eff = _pick_th(Hp, th)
        nk = Hp // th_eff
        # Weights are streamed once per row tile in this path.
        bytes_accessed = (x2.size * c_itemsize
                          + n_row_tiles * (weight_bytes + bias_bytes)
                          + Mp * Ep * out_itemsize)
        out2 = pl.pallas_call(
            ffn_tiled_kernel,
            out_shape=jax.ShapeDtypeStruct((Mp, Ep), out_dtype),
            grid_spec=pltpu.PrefetchScalarGridSpec(
                num_scalar_prefetch=0,
                grid=(n_row_tiles, nk),
                in_specs=[
                    pl.BlockSpec((tm_eff, Ep), lambda i, k: (i, 0)),  # x rows
                    pl.BlockSpec((Ep, th_eff), lambda i, k: (0, k)),  # W1 slab
                    pl.BlockSpec((1, th_eff), lambda i, k: (0, k)),   # b1 slab
                    pl.BlockSpec((th_eff, Ep), lambda i, k: (k, 0)),  # W2 slab
                    pl.BlockSpec((1, Ep), lambda i, k: (0, 0)),       # b2
                ],
                out_specs=pl.BlockSpec((tm_eff, Ep), lambda i, k: (i, 0)),
                scratch_shapes=[pltpu.VMEM((tm_eff, Ep), jnp.float32)],
            ),
            compiler_params=pltpu.CompilerParams(
                dimension_semantics=("parallel", "arbitrary"),
                vmem_limit_bytes=vmem_limit_bytes,
            ),
            cost_estimate=pl.CostEstimate(
                flops=flops, transcendentals=0, bytes_accessed=bytes_accessed),
        )(x2, w1p, b1p, w2p, b2p)

    out = out2[:M, :E].reshape(B, T, E)
    # TODO(synk): nn.Dropout is identity in eval(); training-mode dropout not
    # implemented here.
    return out


def feed_forward(x, w1, b1, w2, b2, **kwargs):
    """One-shot convenience (pads/casts weights per call; prefer
    prepare_params + feed_forward_apply in a real model)."""
    return feed_forward_apply(x, prepare_params(w1, b1, w2, b2), **kwargs)


# ----------------------------- reference & init ------------------------------


def reference_ffn(x, w1, b1, w2, b2, compute_dtype=jnp.bfloat16):
    """Pure-JAX reference mirroring the kernel's mixed-precision math."""
    B, T, E = x.shape
    xc = x.reshape(-1, E).astype(compute_dtype)
    h = jnp.dot(xc, w1.astype(compute_dtype),
                preferred_element_type=jnp.float32)
    h = jnp.maximum(h + b1.astype(jnp.float32), 0.0)
    o = jnp.dot(h.astype(compute_dtype), w2.astype(compute_dtype),
                preferred_element_type=jnp.float32)
    o = o + b2.astype(jnp.float32)
    return o.astype(x.dtype).reshape(B, T, E)


def init_params(key, embedding_size):
    """Deterministic init matching nn.Linear's default U(-1/sqrt(fan_in), +)."""
    E = embedding_size
    H = 4 * E
    k1, k2, k3, k4 = jax.random.split(key, 4)
    bound1 = 1.0 / (E ** 0.5)
    bound2 = 1.0 / (H ** 0.5)
    # stored as (in_features, out_features) == PyTorch weight.T
    w1 = jax.random.uniform(k1, (E, H), jnp.float32, -bound1, bound1)
    b1 = jax.random.uniform(k2, (H,), jnp.float32, -bound1, bound1)
    w2 = jax.random.uniform(k3, (H, E), jnp.float32, -bound2, bound2)
    b2 = jax.random.uniform(k4, (E,), jnp.float32, -bound2, bound2)
    return w1, b1, w2, b2


if __name__ == "__main__":
    key = jax.random.PRNGKey(0)
    kx, kp, kx2, kp2 = jax.random.split(key, 4)

    # Aligned small case: batch=2, seq=256, embedding=128 -> hidden=512.
    B, T, E = 2, 256, 128
    x = jax.random.normal(kx, (B, T, E), jnp.float32)
    w1, b1, w2, b2 = init_params(kp, E)
    params = prepare_params(w1, b1, w2, b2)        # pad + bf16 cast ONCE
    out = jax.block_until_ready(feed_forward_apply(x, params))
    ref = reference_ffn(x, w1, b1, w2, b2)
    assert out.shape == (B, T, E)
    assert jnp.allclose(out, ref, atol=2e-2, rtol=2e-2)

    # Unaligned case exercises the zero-padding path (E=80 -> Ep=128, H=320).
    B2, T2, E2 = 3, 10, 80
    x2 = jax.random.normal(kx2, (B2, T2, E2), jnp.float32)
    p2w = init_params(kp2, E2)
    params2 = prepare_params(*p2w)
    out2 = jax.block_until_ready(feed_forward_apply(x2, params2))
    ref2 = reference_ffn(x2, *p2w)
    assert out2.shape == (B2, T2, E2)
    assert jnp.allclose(out2, ref2, atol=2e-2, rtol=2e-2)

    # bf16-output variant (halves output VMEM/HBM traffic; v7x perf knob).
    out_bf16 = jax.block_until_ready(
        feed_forward_apply(x, params, out_dtype=jnp.bfloat16))
    assert out_bf16.dtype == jnp.bfloat16
    assert jnp.allclose(out_bf16.astype(jnp.float32), ref, atol=5e-2, rtol=5e-2)

    # Force the hidden-tiled accumulation path (large-E code path) for coverage.
    out_tiled = jax.block_until_ready(
        feed_forward_apply(x, params, tm=256, th=256, force_tiled=True))
    assert jnp.allclose(out_tiled, ref, atol=2e-2, rtol=2e-2)

    print("KERNEL_OK")
</pallas_src>

<mosaic_0001>
module attributes {stable_mosaic.version = 11 : i64} {
  func.func @ffn_resident_kernel(%arg0: i32, %arg1: memref<256x128xbf16, #tpu.memory_space<vmem>>, %arg2: memref<128x512xbf16, #tpu.memory_space<vmem>>, %arg3: memref<1x512xf32, #tpu.memory_space<vmem>>, %arg4: memref<512x128xbf16, #tpu.memory_space<vmem>>, %arg5: memref<1x128xf32, #tpu.memory_space<vmem>>, %arg6: memref<256x128xf32, #tpu.memory_space<vmem>>) attributes {dimension_semantics = [#tpu.dimension_semantics<parallel>], iteration_bounds = array<i64: 2>, scalar_prefetch = 0 : i64, scratch_operands = 0 : i64, tpu.core_type = #tpu.core_type<tc>, window_params = [{transform_indices = @transform_0, window_bounds = array<i64: 256, 128>}, {pipeline_mode = #tpu.pipeline_mode<synchronous>, transform_indices = @transform_1, window_bounds = array<i64: 128, 512>}, {pipeline_mode = #tpu.pipeline_mode<synchronous>, transform_indices = @transform_2, window_bounds = array<i64: 1, 512>}, {pipeline_mode = #tpu.pipeline_mode<synchronous>, transform_indices = @transform_3, window_bounds = array<i64: 512, 128>}, {pipeline_mode = #tpu.pipeline_mode<synchronous>, transform_indices = @transform_4, window_bounds = array<i64: 1, 128>}, {transform_indices = @transform_5, window_bounds = array<i64: 256, 128>}]} {
    %c0 = arith.constant 0 : index
    %c0_0 = arith.constant 0 : index
    %0 = vector.load %arg1[%c0, %c0_0] : memref<256x128xbf16, #tpu.memory_space<vmem>>, vector<256x128xbf16>
    %c0_1 = arith.constant 0 : index
    %c0_2 = arith.constant 0 : index
    %1 = vector.load %arg2[%c0_1, %c0_2] : memref<128x512xbf16, #tpu.memory_space<vmem>>, vector<128x512xbf16>
    %cst = arith.constant dense<0.000000e+00> : vector<256x512xf32>
    %2 = tpu.matmul %0, %1, %cst {dimension_numbers = #tpu.dot_dimension_numbers<[1], [0], [0], [1], [0, 0, 1, 1], [], []>} : vector<256x128xbf16>, vector<128x512xbf16>, vector<256x512xf32> -> vector<256x512xf32>
    %c0_3 = arith.constant 0 : index
    %c0_4 = arith.constant 0 : index
    %3 = vector.load %arg3[%c0_3, %c0_4] : memref<1x512xf32, #tpu.memory_space<vmem>>, vector<1x512xf32>
    %4 = vector.broadcast %3 : vector<1x512xf32> to vector<256x512xf32>
    %5 = arith.addf %2, %4 : vector<256x512xf32>
    %cst_5 = arith.constant 0.000000e+00 : f32
    %6 = vector.broadcast %cst_5 : f32 to vector<256x512xf32>
    %7 = arith.maximumf %5, %6 : vector<256x512xf32>
    %8 = arith.truncf %7 : vector<256x512xf32> to vector<256x512xbf16>
    %c0_6 = arith.constant 0 : index
    %c0_7 = arith.constant 0 : index
    %9 = vector.load %arg4[%c0_6, %c0_7] : memref<512x128xbf16, #tpu.memory_space<vmem>>, vector<512x128xbf16>
    %cst_8 = arith.constant dense<0.000000e+00> : vector<256x128xf32>
    %10 = tpu.matmul %8, %9, %cst_8 {dimension_numbers = #tpu.dot_dimension_numbers<[1], [0], [0], [1], [0, 0, 1, 1], [], []>} : vector<256x512xbf16>, vector<512x128xbf16>, vector<256x128xf32> -> vector<256x128xf32>
    %c0_9 = arith.constant 0 : index
    %c0_10 = arith.constant 0 : index
    %11 = vector.load %arg5[%c0_9, %c0_10] : memref<1x128xf32, #tpu.memory_space<vmem>>, vector<1x128xf32>
    %12 = vector.broadcast %11 : vector<1x128xf32> to vector<256x128xf32>
    %13 = arith.addf %10, %12 : vector<256x128xf32>
    %c0_11 = arith.constant 0 : index
    %c0_12 = arith.constant 0 : index
    %14 = vector.load %arg6[%c0_11, %c0_12] : memref<256x128xf32, #tpu.memory_space<vmem>>, vector<256x128xf32>
    tpu.vector_store %arg6[%c0_11, %c0_12], %13 {strides = array<i32>} : memref<256x128xf32, #tpu.memory_space<vmem>>, vector<256x128xf32>,
    return
  }
  func.func @transform_0(%arg0: i32) -> (i32, i32) {
    %c0_i32 = arith.constant 0 : i32
    %c0_i32_0 = arith.constant 0 : i32
    return %arg0, %c0_i32 : i32, i32
  }
  func.func @transform_1(%arg0: i32) -> (i32, i32) {
    %c0_i32 = arith.constant 0 : i32
    %c0_i32_0 = arith.constant 0 : i32
    %c0_i32_1 = arith.constant 0 : i32
    return %c0_i32, %c0_i32_0 : i32, i32
  }
  func.func @transform_2(%arg0: i32) -> (i32, i32) {
    %c0_i32 = arith.constant 0 : i32
    %c0_i32_0 = arith.constant 0 : i32
    %c0_i32_1 = arith.constant 0 : i32
    return %c0_i32, %c0_i32_0 : i32, i32
  }
  func.func @transform_3(%arg0: i32) -> (i32, i32) {
    %c0_i32 = arith.constant 0 : i32
    %c0_i32_0 = arith.constant 0 : i32
    %c0_i32_1 = arith.constant 0 : i32
    return %c0_i32, %c0_i32_0 : i32, i32
  }
  func.func @transform_4(%arg0: i32) -> (i32, i32) {
    %c0_i32 = arith.constant 0 : i32
    %c0_i32_0 = arith.constant 0 : i32
    %c0_i32_1 = arith.constant 0 : i32
    return %c0_i32, %c0_i32_0 : i32, i32
  }
  func.func @transform_5(%arg0: i32) -> (i32, i32) {
    %c0_i32 = arith.constant 0 : i32
    %c0_i32_0 = arith.constant 0 : i32
    return %arg0, %c0_i32 : i32, i32
  }
}

</mosaic_0001>

<llo_original>
// kernel: tpu_custom_call.1
$region0: #{tpu_custom_call.1}
  #allocation0 [shape = 'u32[]', space=smem, size = 0x4, offset = 0x4, fixed_abs, tag = 'smem constant byte address 0x4 - core index']
  #allocation1 [shape = 'u32[72,128]{1,0:T(1,128)}', space=vmem, size = 0x9000, scoped, tag = 'internal scratch']
  %s0 = inlined_call_operand.hbm [shape: bf16[512,128], index: 0, kind: input, shape index: {}]
  %s1 = inlined_call_operand.hbm [shape: bf16[128,512], index: 1, kind: input, shape index: {}]
  %s2 = inlined_call_operand.hbm [shape: f32[1,512], index: 2, kind: input, shape index: {}]
  %s3 = inlined_call_operand.hbm [shape: bf16[512,128], index: 3, kind: input, shape index: {}]
  %s4 = inlined_call_operand.vmem [shape: f32[1,128], index: 4, kind: input, shape index: {}]
  %s5 = inlined_call_operand.hbm [shape: f32[512,128], index: 5, kind: output, shape index: {}]
  %s6 = sld [smem:[#allocation0]]
  $region69: #{tpu_custom_call.1} parent=0
    _
  %s8 = ssub.s32 1, %s6
  %s9 = scalar_select 0, %s8, %s6
  $region1: #{tpu_custom_call.1} parent=0
    #allocation2 [shape = 'u8[131072]{0}', space=vmem, size = 0x20000, scoped, tag = 'input window, operand 0']
    #allocation3 [shape = 's32[2]{0}', space=sflag, size = 0x8, scoped, tag = 'scoped memory for tpu_custom_call.1']
    #allocation4 [shape = 's32[2]{0}', space=sflag, size = 0x8, scoped, tag = 'scoped memory for tpu_custom_call.1']
    #allocation5 [shape = 'u8[131072]{0}', space=vmem, size = 0x20000, scoped, tag = 'input window, operand 1, single buffered']
    #allocation6 [shape = 's32[1]{0}', space=sflag, size = 0x4, scoped, tag = 'scoped memory for tpu_custom_call.1']
    #allocation7 [shape = 'u8[2048]{0}', space=vmem, size = 0x800, scoped, tag = 'input window, operand 2, single buffered']
    #allocation8 [shape = 'u8[131072]{0}', space=vmem, size = 0x20000, scoped, tag = 'input window, operand 3, single buffered']
    #allocation9 [shape = 's32[1]{0}', space=sflag, size = 0x4, scoped, tag = 'scoped memory for tpu_custom_call.1']
    #allocation10 [shape = 'u8[262144]{0}', space=vmem, size = 0x40000, scoped, tag = 'output window, operand 0']
    %10 = vsyncpa [#allocation3], 0
    %s11 = scalar_lea.sflag [#allocation3], 1
    %12 = vsyncpa %s11, 0
    %13 = vsyncpa [#allocation6], 0
    %14 = vsyncpa [#allocation9], 0
    %15 = vsyncpa [#allocation4], 0
    %s16 = scalar_lea.sflag [#allocation4], 1
    %17 = vsyncpa %s16, 0
    loop: start=0, step=1, limit=4
    $region2: #{tpu_custom_call.1} parent=1 // loop_pre_header
      _
    $region3: #{tpu_custom_call.1} parent=1 // loop_header
      %s19 = sphi 0, %s23
      %p20 = scmp.ge.s32.totalorder %s19, 4
      %s29 = sphi 0, %s31
      %s32 = sphi 0, %s29
      %s33 = sphi 0, %s32
      %s49 = sphi 0, %s33
      %s53 = sphi 0, %s53
      %s55 = sphi 0, %s53
      %s56 = sphi 0, %s55
      %s70 = sphi 0, %s56
      %s74 = sphi 0, %s74
      %s76 = sphi 0, %s74
      %s77 = sphi 0, %s76
      %s91 = sphi 0, %s77
      %s95 = sphi 0, %s95
      %s97 = sphi 0, %s95
      %s98 = sphi 0, %s97
      %s112 = sphi 0, %s98
      %s116 = sphi 0, %s116
      %s118 = sphi 0, %s116
      %s119 = sphi 0, %s118
      %s133 = sphi 0, %s119
      %s139 = sphi 0, %s141
      %s142 = sphi 0, %s139
      %s143 = sphi 0, %s142
      %s159 = sphi 0, %s143
    $region4: #{tpu_custom_call.1} parent=1 // loop_header_branch
      %22 = sbr.rel (%p20) target = $region8
    $region5: #{tpu_custom_call.1} parent=1 // loop_body
      %s24 = ssub.s32 %s19, 1
      %s25 = ssub.s32 %s19, 2
      %s26 = sadd.s32 %s19, 1
      %s27 = ssub.s32 %s19, %s26
      %p28 = scmp.eq.s32.totalorder %s27, 0
      %s30 = sadd.s32 %s29, 1
      %s31 = scalar_select %p28, %s29, %s30
      %p34 = pneg %p28
      %p35 = scmp.eq.s32.totalorder %s19, 1
      %p36 = por %p34, %p35
      %p37 = scmp.ne.s32.totalorder %s29, %s32
      %p38 = scmp.eq.s32.totalorder %s19, 0
      %p39 = por %p37, %p38
      %p40 = scmp.ne.s32.totalorder %s29, %s32
      %p41 = scmp.eq.s32.totalorder %s24, 1
      %p42 = por %p40, %p41
      %p43 = scmp.ne.s32.totalorder %s32, %s33
      %p44 = scmp.eq.s32.totalorder %s24, 0
      %p45 = por %p43, %p44
      %p46 = scmp.ne.s32.totalorder %s32, %s33
      %p47 = scmp.eq.s32.totalorder %s25, 1
      %p48 = por %p46, %p47
      %p50 = scmp.ne.s32.totalorder %s33, %s49
      %p51 = scmp.eq.s32.totalorder %s25, 0
      %p52 = por %p50, %p51
      %s54 = sadd.s32 %s53, 1
      %p57 = scmp.eq.s32.totalorder %s19, 1
      %p58 = scmp.ne.s32.totalorder %s53, %s55
      %p59 = scmp.eq.s32.totalorder %s19, 0
      %p60 = por %p58, %p59
      %p61 = scmp.ne.s32.totalorder %s53, %s55
      %p62 = scmp.eq.s32.totalorder %s24, 1
      %p63 = por %p61, %p62
      %p64 = scmp.ne.s32.totalorder %s55, %s56
      %p65 = scmp.eq.s32.totalorder %s24, 0
      %p66 = por %p64, %p65
      %p67 = scmp.ne.s32.totalorder %s55, %s56
      %p68 = scmp.eq.s32.totalorder %s25, 1
      %p69 = por %p67, %p68
      %p71 = scmp.ne.s32.totalorder %s56, %s70
      %p72 = scmp.eq.s32.totalorder %s25, 0
      %p73 = por %p71, %p72
      %s75 = sadd.s32 %s74, 1
      %p78 = scmp.eq.s32.totalorder %s19, 1
      %p79 = scmp.ne.s32.totalorder %s74, %s76
      %p80 = scmp.eq.s32.totalorder %s19, 0
      %p81 = por %p79, %p80
      %p82 = scmp.ne.s32.totalorder %s74, %s76
      %p83 = scmp.eq.s32.totalorder %s24, 1
      %p84 = por %p82, %p83
      %p85 = scmp.ne.s32.totalorder %s76, %s77
      %p86 = scmp.eq.s32.totalorder %s24, 0
      %p87 = por %p85, %p86
      %p88 = scmp.ne.s32.totalorder %s76, %s77
      %p89 = scmp.eq.s32.totalorder %s25, 1
      %p90 = por %p88, %p89
      %p92 = scmp.ne.s32.totalorder %s77, %s91
      %p93 = scmp.eq.s32.totalorder %s25, 0
      %p94 = por %p92, %p93
      %s96 = sadd.s32 %s95, 1
      %p99 = scmp.eq.s32.totalorder %s19, 1
      %p100 = scmp.ne.s32.totalorder %s95, %s97
      %p101 = scmp.eq.s32.totalorder %s19, 0
      %p102 = por %p100, %p101
      %p103 = scmp.ne.s32.totalorder %s95, %s97
      %p104 = scmp.eq.s32.totalorder %s24, 1
      %p105 = por %p103, %p104
      %p106 = scmp.ne.s32.totalorder %s97, %s98
      %p107 = scmp.eq.s32.totalorder %s24, 0
      %p108 = por %p106, %p107
      %p109 = scmp.ne.s32.totalorder %s97, %s98
      %p110 = scmp.eq.s32.totalorder %s25, 1
      %p111 = por %p109, %p110
      %p113 = scmp.ne.s32.totalorder %s98, %s112
      %p114 = scmp.eq.s32.totalorder %s25, 0
      %p115 = por %p113, %p114
      %s117 = sadd.s32 %s116, 1
      %p120 = scmp.eq.s32.totalorder %s19, 1
      %p121 = scmp.ne.s32.totalorder %s116, %s118
      %p122 = scmp.eq.s32.totalorder %s19, 0
      %p123 = por %p121, %p122
      %p124 = scmp.ne.s32.totalorder %s116, %s118
      %p125 = scmp.eq.s32.totalorder %s24, 1
      %p126 = por %p124, %p125
      %p127 = scmp.ne.s32.totalorder %s118, %s119
      %p128 = scmp.eq.s32.totalorder %s24, 0
      %p129 = por %p127, %p128
      %p130 = scmp.ne.s32.totalorder %s118, %s119
      %p131 = scmp.eq.s32.totalorder %s25, 1
      %p132 = por %p130, %p131
      %p134 = scmp.ne.s32.totalorder %s119, %s133
      %p135 = scmp.eq.s32.totalorder %s25, 0
      %p136 = por %p134, %p135
      %s137 = ssub.s32 %s19, %s26
      %p138 = scmp.eq.s32.totalorder %s137, 0
      %s140 = sadd.s32 %s139, 1
      %s141 = scalar_select %p138, %s139, %s140
      %p144 = pneg %p138
      %p145 = scmp.eq.s32.totalorder %s19, 1
      %p146 = por %p144, %p145
      %p147 = scmp.ne.s32.totalorder %s139, %s142
      %p148 = scmp.eq.s32.totalorder %s19, 0
      %p149 = por %p147, %p148
      %p150 = scmp.ne.s32.totalorder %s139, %s142
      %p151 = scmp.eq.s32.totalorder %s24, 1
      %p152 = por %p150, %p151
      %p153 = scmp.ne.s32.totalorder %s142, %s143
      %p154 = scmp.eq.s32.totalorder %s24, 0
      %p155 = por %p153, %p154
      %p156 = scmp.ne.s32.totalorder %s142, %s143
      %p157 = scmp.eq.s32.totalorder %s25, 1
      %p158 = por %p156, %p157
      %p160 = scmp.ne.s32.totalorder %s143, %s159
      %p161 = scmp.eq.s32.totalorder %s25, 0
      %p162 = por %p160, %p161
      %p163 = scmp.le.s32.totalorder 1, %s19
      %p164 = scmp.lt.s32.totalorder %s19, 3
      %p165 = pnand %p163, %p164
      %p166 = pneg %p165
      // Predicated region
      $region9: #{tpu_custom_call.1} parent=5 // pred_check
        _
      $region10: #{tpu_custom_call.1} parent=5 // pred_check_branch
        %168 = sbr.rel (%p165) target = $region12
      $region11: #{tpu_custom_call.1} parent=5 // pred_region
        %s169 = ssub.s32 %s19, 1
        // Predicated region
        $region13: #{tpu_custom_call.1} parent=11 // pred_check
          %p170 = pneg %p66
        $region14: #{tpu_custom_call.1} parent=11 // pred_check_branch
          %172 = sbr.rel (%p170) target = $region16
        $region15: #{tpu_custom_call.1} parent=11 // pred_region
          %174 = vsyncadd [#allocation6], 0
          %s175 = sshll.u32 %s1, 4
          %s176 = int_to_ptr.hbm [resolvable:$true] %s175
          %s177 = sshll.u32 [#allocation5], 4
          %s178 = int_to_ptr.vmem [resolvable:$true] %s177
          %183 = dma.hbm_to_vmem [thread:$0]  %s176, 4096, %s178, [#allocation6], 256, 256, 16
        $region16: #{tpu_custom_call.1} parent=11 // pred_fallthru
          _
        // Predicated region
        $region17: #{tpu_custom_call.1} parent=11 // pred_check
          %p184 = pneg %p87
        $region18: #{tpu_custom_call.1} parent=11 // pred_check_branch
          %186 = sbr.rel (%p184) target = $region20
        $region19: #{tpu_custom_call.1} parent=11 // pred_region
          %188 = vsyncadd [#allocation6], 0
          %s190 = sshll.u32 %s2, 4
          %s191 = int_to_ptr.hbm [resolvable:$true] %s190
          %s192 = sshll.u32 [#allocation7], 4
          %s193 = int_to_ptr.vmem [resolvable:$true] %s192
          %195 = dma.hbm_to_vmem [thread:$0]  %s191, 64, %s193, [#allocation6]
        $region20: #{tpu_custom_call.1} parent=11 // pred_fallthru
          _
        // Predicated region
        $region21: #{tpu_custom_call.1} parent=11 // pred_check
          %p196 = pneg %p108
        $region22: #{tpu_custom_call.1} parent=11 // pred_check_branch
          %198 = sbr.rel (%p196) target = $region24
        $region23: #{tpu_custom_call.1} parent=11 // pred_region
          %200 = vsyncadd [#allocation9], 0
          %s201 = sshll.u32 %s3, 4
          %s202 = int_to_ptr.hbm [resolvable:$true] %s201
          %s203 = sshll.u32 [#allocation8], 4
          %s204 = int_to_ptr.vmem [resolvable:$true] %s203
          %209 = dma.hbm_to_vmem [thread:$0]  %s202, 4096, %s204, [#allocation9], 64, 64, 4
        $region24: #{tpu_custom_call.1} parent=11 // pred_fallthru
          _
        // Predicated region
        $region25: #{tpu_custom_call.1} parent=11 // pred_check
          %p210 = pneg %p129
        $region26: #{tpu_custom_call.1} parent=11 // pred_check_branch
          %212 = sbr.rel (%p210) target = $region28
        $region27: #{tpu_custom_call.1} parent=11 // pred_region
          _
        $region28: #{tpu_custom_call.1} parent=11 // pred_fallthru
          _
      $region12: #{tpu_custom_call.1} parent=5 // pred_fallthru
        _
      %p213 = scmp.lt.s32.totalorder %s19, 2
      // Predicated region
      $region29: #{tpu_custom_call.1} parent=5 // pred_check
        %p214 = pneg %p213
      $region30: #{tpu_custom_call.1} parent=5 // pred_check_branch
        %216 = sbr.rel (%p214) target = $region32
      $region31: #{tpu_custom_call.1} parent=5 // pred_region
        // Predicated region
        $region33: #{tpu_custom_call.1} parent=31 // pred_check
          %p217 = pneg %p39
        $region34: #{tpu_custom_call.1} parent=31 // pred_check_branch
          %219 = sbr.rel (%p217) target = $region36
        $region35: #{tpu_custom_call.1} parent=31 // pred_region
          %s220 = sand.u32 %s29, 1
          %s221 = scalar_lea.sflag [#allocation3], %s220
          %s222 = sand.u32 %s29, 1
          %s223 = smul.addr %s222, 128
          %s224 = scalar_lea.vmem [#allocation2], %s223
          %s225 = smul.u32 32, %s19
          %227 = vsyncadd %s221, 0
          %s228 = smul.addr %s225, 4
          %s229 = scalar_lea.hbm %s0, %s228
          %s230 = sshll.u32 %s229, 4
          %s231 = int_to_ptr.hbm [resolvable:$true] %s230
          %s232 = sshll.u32 %s224, 4
          %s233 = int_to_ptr.vmem [resolvable:$true] %s232
          %238 = dma.hbm_to_vmem [thread:$0]  %s231, 2048, %s233, %s221, 64, 64, 4
        $region36: #{tpu_custom_call.1} parent=31 // pred_fallthru
          _
      $region32: #{tpu_custom_call.1} parent=5 // pred_fallthru
        _
      %p239 = scmp.le.s32.totalorder 1, %s19
      %p240 = scmp.lt.s32.totalorder %s19, 3
      %p241 = pnand %p239, %p240
      %p242 = pneg %p241
      // Predicated region
      $region37: #{tpu_custom_call.1} parent=5 // pred_check
        _
      $region38: #{tpu_custom_call.1} parent=5 // pred_check_branch
        %244 = sbr.rel (%p241) target = $region40
      $region39: #{tpu_custom_call.1} parent=5 // pred_region
        %s245 = ssub.s32 %s19, 1
        %s246 = sand.u32 %s32, 1
        %s247 = scalar_lea.sflag [#allocation3], %s246
        %s248 = sand.u32 %s32, 1
        %s249 = smul.addr %s248, 128
        %s250 = scalar_lea.vmem [#allocation2], %s249
        // Predicated region
        $region41: #{tpu_custom_call.1} parent=39 // pred_check
          %p251 = pneg %p45
        $region42: #{tpu_custom_call.1} parent=39 // pred_check_branch
          %253 = sbr.rel (%p251) target = $region44
        $region43: #{tpu_custom_call.1} parent=39 // pred_region
          %255 = dma.done %s247, 2048
        $region44: #{tpu_custom_call.1} parent=39 // pred_fallthru
          _
        // Predicated region
        $region45: #{tpu_custom_call.1} parent=39 // pred_check
          %p256 = pneg %p66
        $region46: #{tpu_custom_call.1} parent=39 // pred_check_branch
          %258 = sbr.rel (%p256) target = $region48
        $region47: #{tpu_custom_call.1} parent=39 // pred_region
          %260 = dma.done [#allocation6], 4096
        $region48: #{tpu_custom_call.1} parent=39 // pred_fallthru
          _
        // Predicated region
        $region49: #{tpu_custom_call.1} parent=39 // pred_check
          %p261 = pneg %p87
        $region50: #{tpu_custom_call.1} parent=39 // pred_check_branch
          %263 = sbr.rel (%p261) target = $region52
        $region51: #{tpu_custom_call.1} parent=39 // pred_region
          %265 = dma.done [#allocation6], 64
        $region52: #{tpu_custom_call.1} parent=39 // pred_fallthru
          _
        // Predicated region
        $region53: #{tpu_custom_call.1} parent=39 // pred_check
          %p266 = pneg %p108
        $region54: #{tpu_custom_call.1} parent=39 // pred_check_branch
          %268 = sbr.rel (%p266) target = $region56
        $region55: #{tpu_custom_call.1} parent=39 // pred_region
          %270 = dma.done [#allocation9], 4096
        $region56: #{tpu_custom_call.1} parent=39 // pred_fallthru
          _
        %s271 = sand.u32 %s32, 1
        %s272 = scalar_lea.sflag [#allocation3], %s271
        %s273 = sand.u32 %s32, 1
        %s274 = smul.addr %s273, 128
        %s275 = scalar_lea.vmem [#allocation2], %s274
        %p276 = pneg %p45
        %p277 = pneg %p42
        %p278 = pneg %p66
        %p279 = pneg %p63
        %p280 = pneg %p87
        %p281 = pneg %p84
        %p282 = pneg %p108
        %p283 = pneg %p105
        %p284 = pneg %p129
        %p285 = pneg %p126
        %p286 = pneg %p155
        %p287 = pneg %p152
        %s288 = sand.u32 %s142, 1
        %s289 = scalar_lea.sflag [#allocation4], %s288
        %s290 = sand.u32 %s142, 1
        %s291 = smul.addr %s290, 256
        %s292 = scalar_lea.vmem [#allocation10], %s291
        %s293 = smul.u32 32, %s24
        %s294 = smul.u32 32, %s24
        %v295 = vld [vmem:[%s250] sm:$0xf]
        %v296 = vld [vmem:[%s250 + $0x4] sm:$0xf]
        %v297 = vld [vmem:[%s250 + $0x8] sm:$0xf]
        %v298 = vld [vmem:[%s250 + $0xc] sm:$0xf]
        %v299 = vld [vmem:[%s250 + $0x10] sm:$0xf]
        %v300 = vld [vmem:[%s250 + $0x14] sm:$0xf]
        %v301 = vld [vmem:[%s250 + $0x18] sm:$0xf]
        %v302 = vld [vmem:[%s250 + $0x1c] sm:$0xf]
        %v303 = vld [vmem:[%s250 + $0x20] sm:$0xf]
        %v304 = vld [vmem:[%s250 + $0x24] sm:$0xf]
        %v305 = vld [vmem:[%s250 + $0x28] sm:$0xf]
        %v306 = vld [vmem:[%s250 + $0x2c] sm:$0xf]
        %v307 = vld [vmem:[%s250 + $0x30] sm:$0xf]
        %v308 = vld [vmem:[%s250 + $0x34] sm:$0xf]
        %v309 = vld [vmem:[%s250 + $0x38] sm:$0xf]
        %v310 = vld [vmem:[%s250 + $0x3c] sm:$0xf]
        %v311 = vld [vmem:[%s250 + $0x40] sm:$0xf]
        %v312 = vld [vmem:[%s250 + $0x44] sm:$0xf]
        %v313 = vld [vmem:[%s250 + $0x48] sm:$0xf]
        %v314 = vld [vmem:[%s250 + $0x4c] sm:$0xf]
        %v315 = vld [vmem:[%s250 + $0x50] sm:$0xf]
        %v316 = vld [vmem:[%s250 + $0x54] sm:$0xf]
        %v317 = vld [vmem:[%s250 + $0x58] sm:$0xf]
        %v318 = vld [vmem:[%s250 + $0x5c] sm:$0xf]
        %v319 = vld [vmem:[%s250 + $0x60] sm:$0xf]
        %v320 = vld [vmem:[%s250 + $0x64] sm:$0xf]
        %v321 = vld [vmem:[%s250 + $0x68] sm:$0xf]
        %v322 = vld [vmem:[%s250 + $0x6c] sm:$0xf]
        %v323 = vld [vmem:[%s250 + $0x70] sm:$0xf]
        %v324 = vld [vmem:[%s250 + $0x74] sm:$0xf]
        %v325 = vld [vmem:[%s250 + $0x78] sm:$0xf]
        %v326 = vld [vmem:[%s250 + $0x7c] sm:$0xf]
        %v327 = vld [vmem:[#allocation5] sm:$0xff]
        %v328 = vld [vmem:[#allocation5 + $0x8] sm:$0xff]
        %v329 = vld [vmem:[#allocation5 + $0x10] sm:$0xff]
        %v330 = vld [vmem:[#allocation5 + $0x18] sm:$0xff]
        %v331 = vld [vmem:[#allocation5 + $0x20] sm:$0xff]
        %v332 = vld [vmem:[#allocation5 + $0x28] sm:$0xff]
        %v333 = vld [vmem:[#allocation5 + $0x30] sm:$0xff]
        %v334 = vld [vmem:[#allocation5 + $0x38] sm:$0xff]
        %v335 = vld [vmem:[#allocation5 + $0x40] sm:$0xff]
        %v336 = vld [vmem:[#allocation5 + $0x48] sm:$0xff]
        %v337 = vld [vmem:[#allocation5 + $0x50] sm:$0xff]
        %v338 = vld [vmem:[#allocation5 + $0x58] sm:$0xff]
        %v339 = vld [vmem:[#allocation5 + $0x60] sm:$0xff]
        %v340 = vld [vmem:[#allocation5 + $0x68] sm:$0xff]
        %v341 = vld [vmem:[#allocation5 + $0x70] sm:$0xff]
        %v342 = vld [vmem:[#allocation5 + $0x78] sm:$0xff]
        %v343 = vld [vmem:[#allocation5 + $0x80] sm:$0xff]
        %v344 = vld [vmem:[#allocation5 + $0x88] sm:$0xff]
        %v345 = vld [vmem:[#allocation5 + $0x90] sm:$0xff]
        %v346 = vld [vmem:[#allocation5 + $0x98] sm:$0xff]
        %v347 = vld [vmem:[#allocation5 + $0xa0] sm:$0xff]
        %v348 = vld [vmem:[#allocation5 + $0xa8] sm:$0xff]
        %v349 = vld [vmem:[#allocation5 + $0xb0] sm:$0xff]
        %v350 = vld [vmem:[#allocation5 + $0xb8] sm:$0xff]
        %v351 = vld [vmem:[#allocation5 + $0xc0] sm:$0xff]
        %v352 = vld [vmem:[#allocation5 + $0xc8] sm:$0xff]
        %v353 = vld [vmem:[#allocation5 + $0xd0] sm:$0xff]
        %v354 = vld [vmem:[#allocation5 + $0xd8] sm:$0xff]
        %v355 = vld [vmem:[#allocation5 + $0xe0] sm:$0xff]
        %v356 = vld [vmem:[#allocation5 + $0xe8] sm:$0xff]
        %v357 = vld [vmem:[#allocation5 + $0xf0] sm:$0xff]
        %v358 = vld [vmem:[#allocation5 + $0xf8] sm:$0xff]
        %v359 = vld [vmem:[#allocation7] sm:$0xf]
        %v361 = vperm.slane %v359, 0
        %v362 = vperm.slane %v359, 1
        %v363 = vperm.slane %v359, 2
        %v364 = vperm.slane %v359, 3
        %v401 = vunpack.c.l.b16 %v295
        %v402 = vunpack.c.l.b16 %v296
        %v403 = vunpack.c.l.b16 %v297
        %v404 = vunpack.c.l.b16 %v298
        %v405 = vunpack.c.l.b16 %v299
        %v406 = vunpack.c.l.b16 %v300
        %v407 = vunpack.c.l.b16 %v301
        %v408 = vunpack.c.l.b16 %v302
        %v409 = vunpack.c.l.b16 %v303
        %v410 = vunpack.c.l.b16 %v304
        %v411 = vunpack.c.l.b16 %v305
        %v412 = vunpack.c.l.b16 %v306
        %v413 = vunpack.c.l.b16 %v307
        %v414 = vunpack.c.l.b16 %v308
        %v415 = vunpack.c.l.b16 %v309
        %v416 = vunpack.c.l.b16 %v310
        %v417 = vunpack.c.l.b16 %v311
        %v418 = vunpack.c.l.b16 %v312
        %v419 = vunpack.c.l.b16 %v313
        %v420 = vunpack.c.l.b16 %v314
        %v421 = vunpack.c.l.b16 %v315
        %v422 = vunpack.c.l.b16 %v316
        %v423 = vunpack.c.l.b16 %v317
        %v424 = vunpack.c.l.b16 %v318
        %v425 = vunpack.c.l.b16 %v319
        %v426 = vunpack.c.l.b16 %v320
        %v427 = vunpack.c.l.b16 %v321
        %v428 = vunpack.c.l.b16 %v322
        %v429 = vunpack.c.l.b16 %v323
        %v430 = vunpack.c.l.b16 %v324
        %v431 = vunpack.c.l.b16 %v325
        %v432 = vunpack.c.l.b16 %v326
        %v433 = vpack.c.b16 %v402, %v401
        %v434 = vpack.c.b16 %v404, %v403
        %v435 = vpack.c.b16 %v406, %v405
        %v436 = vpack.c.b16 %v408, %v407
        %v437 = vpack.c.b16 %v410, %v409
        %v438 = vpack.c.b16 %v412, %v411
        %v439 = vpack.c.b16 %v414, %v413
        %v440 = vpack.c.b16 %v416, %v415
        %v441 = vpack.c.b16 %v418, %v417
        %v442 = vpack.c.b16 %v420, %v419
        %v443 = vpack.c.b16 %v422, %v421
        %v444 = vpack.c.b16 %v424, %v423
        %v445 = vpack.c.b16 %v426, %v425
        %v446 = vpack.c.b16 %v428, %v427
        %v447 = vpack.c.b16 %v430, %v429
        %v448 = vpack.c.b16 %v432, %v431
        %v497 = vunpack.c.l.b16 %v327
        %v498 = vunpack.c.h.b16 %v327
        %v499 = vunpack.c.l.b16 %v328
        %v500 = vunpack.c.h.b16 %v328
        %v501 = vunpack.c.l.b16 %v329
        %v502 = vunpack.c.h.b16 %v329
        %v503 = vunpack.c.l.b16 %v330
        %v504 = vunpack.c.h.b16 %v330
        %v505 = vunpack.c.l.b16 %v331
        %v506 = vunpack.c.h.b16 %v331
        %v507 = vunpack.c.l.b16 %v332
        %v508 = vunpack.c.h.b16 %v332
        %v509 = vunpack.c.l.b16 %v333
        %v510 = vunpack.c.h.b16 %v333
        %v511 = vunpack.c.l.b16 %v334
        %v512 = vunpack.c.h.b16 %v334
        %v513 = vunpack.c.l.b16 %v335
        %v514 = vunpack.c.h.b16 %v335
        %v515 = vunpack.c.l.b16 %v336
        %v516 = vunpack.c.h.b16 %v336
        %v517 = vunpack.c.l.b16 %v337
        %v518 = vunpack.c.h.b16 %v337
        %v519 = vunpack.c.l.b16 %v338
        %v520 = vunpack.c.h.b16 %v338
        %v521 = vunpack.c.l.b16 %v339
        %v522 = vunpack.c.h.b16 %v339
        %v523 = vunpack.c.l.b16 %v340
        %v524 = vunpack.c.h.b16 %v340
        %v525 = vunpack.c.l.b16 %v341
        %v526 = vunpack.c.h.b16 %v341
        %v527 = vunpack.c.l.b16 %v342
        %v528 = vunpack.c.h.b16 %v342
        %v529 = vunpack.c.l.b16 %v343
        %v530 = vunpack.c.h.b16 %v343
        %v531 = vunpack.c.l.b16 %v344
        %v532 = vunpack.c.h.b16 %v344
        %v533 = vunpack.c.l.b16 %v345
        %v534 = vunpack.c.h.b16 %v345
        %v535 = vunpack.c.l.b16 %v346
        %v536 = vunpack.c.h.b16 %v346
        %v537 = vunpack.c.l.b16 %v347
        %v538 = vunpack.c.h.b16 %v347
        %v539 = vunpack.c.l.b16 %v348
        %v540 = vunpack.c.h.b16 %v348
        %v541 = vunpack.c.l.b16 %v349
        %v542 = vunpack.c.h.b16 %v349
        %v543 = vunpack.c.l.b16 %v350
        %v544 = vunpack.c.h.b16 %v350
        %v545 = vunpack.c.l.b16 %v351
        %v546 = vunpack.c.h.b16 %v351
        %v547 = vunpack.c.l.b16 %v352
        %v548 = vunpack.c.h.b16 %v352
        %v549 = vunpack.c.l.b16 %v353
        %v550 = vunpack.c.h.b16 %v353
        %v551 = vunpack.c.l.b16 %v354
        %v552 = vunpack.c.h.b16 %v354
        %v553 = vunpack.c.l.b16 %v355
        %v554 = vunpack.c.h.b16 %v355
        %v555 = vunpack.c.l.b16 %v356
        %v556 = vunpack.c.h.b16 %v356
        %v557 = vunpack.c.l.b16 %v357
        %v558 = vunpack.c.h.b16 %v357
        %v559 = vunpack.c.l.b16 %v358
        %v560 = vunpack.c.h.b16 %v358
        %v561 = vpack.c.b16 %v501, %v497
        %v562 = vpack.c.b16 %v502, %v498
        %v563 = vpack.c.b16 %v503, %v499
        %v564 = vpack.c.b16 %v504, %v500
        %v565 = vpack.c.b16 %v509, %v505
        %v566 = vpack.c.b16 %v510, %v506
        %v567 = vpack.c.b16 %v511, %v507
        %v568 = vpack.c.b16 %v512, %v508
        %v569 = vpack.c.b16 %v517, %v513
        %v570 = vpack.c.b16 %v518, %v514
        %v571 = vpack.c.b16 %v519, %v515
        %v572 = vpack.c.b16 %v520, %v516
        %v573 = vpack.c.b16 %v525, %v521
        %v574 = vpack.c.b16 %v526, %v522
        %v575 = vpack.c.b16 %v527, %v523
        %v576 = vpack.c.b16 %v528, %v524
        %v577 = vpack.c.b16 %v533, %v529
        %v578 = vpack.c.b16 %v534, %v530
        %v579 = vpack.c.b16 %v535, %v531
        %v580 = vpack.c.b16 %v536, %v532
        %v581 = vpack.c.b16 %v541, %v537
        %v582 = vpack.c.b16 %v542, %v538
        %v583 = vpack.c.b16 %v543, %v539
        %v584 = vpack.c.b16 %v544, %v540
        %v585 = vpack.c.b16 %v549, %v545
        %v586 = vpack.c.b16 %v550, %v546
        %v587 = vpack.c.b16 %v551, %v547
        %v588 = vpack.c.b16 %v552, %v548
        %v589 = vpack.c.b16 %v557, %v553
        %v590 = vpack.c.b16 %v558, %v554
        %v591 = vpack.c.b16 %v559, %v555
        %v592 = vpack.c.b16 %v560, %v556
        %625 = vmatpush.bf16.msra.mxu0 %v589
        %626 = vmatpush.bf16.msra.mxu0 %v585
        %627 = vmatpush.bf16.msra.mxu0 %v581
        %628 = vmatpush.bf16.msra.mxu0 %v577
        %629 = vmatpush.bf16.msra.mxu0 %v573
        %630 = vmatpush.bf16.msra.mxu0 %v569
        %631 = vmatpush.bf16.msra.mxu0 %v565
        %632 = vmatpush.bf16.msra.mxu0 %v561
        %633 = vmatmul.bf16.gmra.mxu0 %v433
        %v634 = vpop.f32.mrf.mxu0
        %v635 = vadd.f32 %v361, %v634
        %v636 = vpop.f32.mrf.mxu0
        %v637 = vadd.f32 %v361, %v636
        %638 = vmatmul.bf16.gmra.mxu0 %v434
        %v639 = vpop.f32.mrf.mxu0
        %v640 = vadd.f32 %v361, %v639
        %v641 = vpop.f32.mrf.mxu0
        %v642 = vadd.f32 %v361, %v641
        %643 = vmatmul.bf16.gmra.mxu0 %v435
        %v644 = vpop.f32.mrf.mxu0
        %v645 = vadd.f32 %v361, %v644
        %v646 = vpop.f32.mrf.mxu0
        %v647 = vadd.f32 %v361, %v646
        %648 = vmatmul.bf16.gmra.mxu0 %v436
        %v649 = vpop.f32.mrf.mxu0
        %v650 = vadd.f32 %v361, %v649
        %v651 = vpop.f32.mrf.mxu0
        %v652 = vadd.f32 %v361, %v651
        %653 = vmatmul.bf16.gmra.mxu0 %v437
        %v654 = vpop.f32.mrf.mxu0
        %v655 = vadd.f32 %v361, %v654
        %v656 = vpop.f32.mrf.mxu0
        %v657 = vadd.f32 %v361, %v656
        %658 = vmatmul.bf16.gmra.mxu0 %v438
        %v659 = vpop.f32.mrf.mxu0
        %v660 = vadd.f32 %v361, %v659
        %v661 = vpop.f32.mrf.mxu0
        %v662 = vadd.f32 %v361, %v661
        %663 = vmatmul.bf16.gmra.mxu0 %v439
        %v664 = vpop.f32.mrf.mxu0
        %v665 = vadd.f32 %v361, %v664
        %v666 = vpop.f32.mrf.mxu0
        %v667 = vadd.f32 %v361, %v666
        %668 = vmatmul.bf16.gmra.mxu0 %v440
        %v669 = vpop.f32.mrf.mxu0
        %v670 = vadd.f32 %v361, %v669
        %v671 = vpop.f32.mrf.mxu0
        %v672 = vadd.f32 %v361, %v671
        %673 = vmatmul.bf16.gmra.mxu0 %v441
        %v674 = vpop.f32.mrf.mxu0
        %v675 = vadd.f32 %v361, %v674
        %v676 = vpop.f32.mrf.mxu0
        %v677 = vadd.f32 %v361, %v676
        %678 = vmatmul.bf16.gmra.mxu0 %v442
        %v679 = vpop.f32.mrf.mxu0
        %v680 = vadd.f32 %v361, %v679
        %v681 = vpop.f32.mrf.mxu0
        %v682 = vadd.f32 %v361, %v681
        %683 = vmatmul.bf16.gmra.mxu0 %v443
        %v684 = vpop.f32.mrf.mxu0
        %v685 = vadd.f32 %v361, %v684
        %v686 = vpop.f32.mrf.mxu0
        %v687 = vadd.f32 %v361, %v686
        %688 = vmatmul.bf16.gmra.mxu0 %v444
        %v689 = vpop.f32.mrf.mxu0
        %v690 = vadd.f32 %v361, %v689
        %v691 = vpop.f32.mrf.mxu0
        %v692 = vadd.f32 %v361, %v691
        %693 = vmatmul.bf16.gmra.mxu0 %v445
        %v694 = vpop.f32.mrf.mxu0
        %v695 = vadd.f32 %v361, %v694
        %v696 = vpop.f32.mrf.mxu0
        %v697 = vadd.f32 %v361, %v696
        %698 = vmatmul.bf16.gmra.mxu0 %v446
        %v699 = vpop.f32.mrf.mxu0
        %v700 = vadd.f32 %v361, %v699
        %v701 = vpop.f32.mrf.mxu0
        %v702 = vadd.f32 %v361, %v701
        %703 = vmatmul.bf16.gmra.mxu0 %v447
        %v704 = vpop.f32.mrf.mxu0
        %v705 = vadd.f32 %v361, %v704
        %v706 = vpop.f32.mrf.mxu0
        %v707 = vadd.f32 %v361, %v706
        %708 = vmatmul.bf16.gmra.mxu0 %v448
        %v709 = vpop.f32.mrf.mxu0
        %v710 = vadd.f32 %v361, %v709
        %v711 = vpop.f32.mrf.mxu0
        %v712 = vadd.f32 %v361, %v711
        %713 = vdwg.mxu0
        %714 = vmatpush.bf16.msra.mxu0 %v590
        %715 = vmatpush.bf16.msra.mxu0 %v586
        %716 = vmatpush.bf16.msra.mxu0 %v582
        %717 = vmatpush.bf16.msra.mxu0 %v578
        %718 = vmatpush.bf16.msra.mxu0 %v574
        %719 = vmatpush.bf16.msra.mxu0 %v570
        %720 = vmatpush.bf16.msra.mxu0 %v566
        %721 = vmatpush.bf16.msra.mxu0 %v562
        %722 = vmatmul.bf16.gmra.mxu0 %v433
        %v723 = vpop.f32.mrf.mxu0
        %v724 = vadd.f32 %v362, %v723
        %v725 = vpop.f32.mrf.mxu0
        %v726 = vadd.f32 %v362, %v725
        %727 = vmatmul.bf16.gmra.mxu0 %v434
        %v728 = vpop.f32.mrf.mxu0
        %v729 = vadd.f32 %v362, %v728
        %v730 = vpop.f32.mrf.mxu0
        %v731 = vadd.f32 %v362, %v730
        %732 = vmatmul.bf16.gmra.mxu0 %v435
        %v733 = vpop.f32.mrf.mxu0
        %v734 = vadd.f32 %v362, %v733
        %v735 = vpop.f32.mrf.mxu0
        %v736 = vadd.f32 %v362, %v735
        %737 = vmatmul.bf16.gmra.mxu0 %v436
        %v738 = vpop.f32.mrf.mxu0
        %v739 = vadd.f32 %v362, %v738
        %v740 = vpop.f32.mrf.mxu0
        %v741 = vadd.f32 %v362, %v740
        %742 = vmatmul.bf16.gmra.mxu0 %v437
        %v743 = vpop.f32.mrf.mxu0
        %v744 = vadd.f32 %v362, %v743
        %v745 = vpop.f32.mrf.mxu0
        %v746 = vadd.f32 %v362, %v745
        %747 = vmatmul.bf16.gmra.mxu0 %v438
        %v748 = vpop.f32.mrf.mxu0
        %v749 = vadd.f32 %v362, %v748
        %v750 = vpop.f32.mrf.mxu0
        %v751 = vadd.f32 %v362, %v750
        %752 = vmatmul.bf16.gmra.mxu0 %v439
        %v753 = vpop.f32.mrf.mxu0
        %v754 = vadd.f32 %v362, %v753
        %v755 = vpop.f32.mrf.mxu0
        %v756 = vadd.f32 %v362, %v755
        %757 = vmatmul.bf16.gmra.mxu0 %v440
        %v758 = vpop.f32.mrf.mxu0
        %v759 = vadd.f32 %v362, %v758
        %v760 = vpop.f32.mrf.mxu0
        %v761 = vadd.f32 %v362, %v760
        %762 = vmatmul.bf16.gmra.mxu0 %v441
        %v763 = vpop.f32.mrf.mxu0
        %v764 = vadd.f32 %v362, %v763
        %v765 = vpop.f32.mrf.mxu0
        %v766 = vadd.f32 %v362, %v765
        %767 = vmatmul.bf16.gmra.mxu0 %v442
        %v768 = vpop.f32.mrf.mxu0
        %v769 = vadd.f32 %v362, %v768
        %v770 = vpop.f32.mrf.mxu0
        %v771 = vadd.f32 %v362, %v770
        %772 = vmatmul.bf16.gmra.mxu0 %v443
        %v773 = vpop.f32.mrf.mxu0
        %v774 = vadd.f32 %v362, %v773
        %v775 = vpop.f32.mrf.mxu0
        %v776 = vadd.f32 %v362, %v775
        %777 = vmatmul.bf16.gmra.mxu0 %v444
        %v778 = vpop.f32.mrf.mxu0
        %v779 = vadd.f32 %v362, %v778
        %v780 = vpop.f32.mrf.mxu0
        %v781 = vadd.f32 %v362, %v780
        %782 = vmatmul.bf16.gmra.mxu0 %v445
        %v783 = vpop.f32.mrf.mxu0
        %v784 = vadd.f32 %v362, %v783
        %v785 = vpop.f32.mrf.mxu0
        %v786 = vadd.f32 %v362, %v785
        %787 = vmatmul.bf16.gmra.mxu0 %v446
        %v788 = vpop.f32.mrf.mxu0
        %v789 = vadd.f32 %v362, %v788
        %v790 = vpop.f32.mrf.mxu0
        %v791 = vadd.f32 %v362, %v790
        %792 = vmatmul.bf16.gmra.mxu0 %v447
        %v793 = vpop.f32.mrf.mxu0
        %v794 = vadd.f32 %v362, %v793
        %v795 = vpop.f32.mrf.mxu0
        %v796 = vadd.f32 %v362, %v795
        %797 = vmatmul.bf16.gmra.mxu0 %v448
        %v798 = vpop.f32.mrf.mxu0
        %v799 = vadd.f32 %v362, %v798
        %v800 = vpop.f32.mrf.mxu0
        %v801 = vadd.f32 %v362, %v800
        %802 = vdwg.mxu0
        %803 = vmatpush.bf16.msra.mxu0 %v591
        %804 = vmatpush.bf16.msra.mxu0 %v587
        %805 = vmatpush.bf16.msra.mxu0 %v583
        %806 = vmatpush.bf16.msra.mxu0 %v579
        %807 = vmatpush.bf16.msra.mxu0 %v575
        %808 = vmatpush.bf16.msra.mxu0 %v571
        %809 = vmatpush.bf16.msra.mxu0 %v567
        %810 = vmatpush.bf16.msra.mxu0 %v563
        %811 = vmatmul.bf16.gmra.mxu0 %v433
        %v812 = vpop.f32.mrf.mxu0
        %v813 = vadd.f32 %v363, %v812
        %v814 = vpop.f32.mrf.mxu0
        %v815 = vadd.f32 %v363, %v814
        %816 = vmatmul.bf16.gmra.mxu0 %v434
        %v817 = vpop.f32.mrf.mxu0
        %v818 = vadd.f32 %v363, %v817
        %v819 = vpop.f32.mrf.mxu0
        %v820 = vadd.f32 %v363, %v819
        %821 = vmatmul.bf16.gmra.mxu0 %v435
        %v822 = vpop.f32.mrf.mxu0
        %v823 = vadd.f32 %v363, %v822
        %v824 = vpop.f32.mrf.mxu0
        %v825 = vadd.f32 %v363, %v824
        %826 = vmatmul.bf16.gmra.mxu0 %v436
        %v827 = vpop.f32.mrf.mxu0
        %v828 = vadd.f32 %v363, %v827
        %v829 = vpop.f32.mrf.mxu0
        %v830 = vadd.f32 %v363, %v829
        %831 = vmatmul.bf16.gmra.mxu0 %v437
        %v832 = vpop.f32.mrf.mxu0
        %v833 = vadd.f32 %v363, %v832
        %v834 = vpop.f32.mrf.mxu0
        %v835 = vadd.f32 %v363, %v834
        %836 = vmatmul.bf16.gmra.mxu0 %v438
        %v837 = vpop.f32.mrf.mxu0
        %v838 = vadd.f32 %v363, %v837
        %v839 = vpop.f32.mrf.mxu0
        %v840 = vadd.f32 %v363, %v839
        %841 = vmatmul.bf16.gmra.mxu0 %v439
        %v842 = vpop.f32.mrf.mxu0
        %v843 = vadd.f32 %v363, %v842
        %v844 = vpop.f32.mrf.mxu0
        %v845 = vadd.f32 %v363, %v844
        %846 = vmatmul.bf16.gmra.mxu0 %v440
        %v847 = vpop.f32.mrf.mxu0
        %v848 = vadd.f32 %v363, %v847
        %v849 = vpop.f32.mrf.mxu0
        %v850 = vadd.f32 %v363, %v849
        %851 = vmatmul.bf16.gmra.mxu0 %v441
        %v852 = vpop.f32.mrf.mxu0
        %v853 = vadd.f32 %v363, %v852
        %v854 = vpop.f32.mrf.mxu0
        %v855 = vadd.f32 %v363, %v854
        %856 = vmatmul.bf16.gmra.mxu0 %v442
        %v857 = vpop.f32.mrf.mxu0
        %v858 = vadd.f32 %v363, %v857
        %v859 = vpop.f32.mrf.mxu0
        %v860 = vadd.f32 %v363, %v859
        %861 = vmatmul.bf16.gmra.mxu0 %v443
        %v862 = vpop.f32.mrf.mxu0
        %v863 = vadd.f32 %v363, %v862
        %v864 = vpop.f32.mrf.mxu0
        %v865 = vadd.f32 %v363, %v864
        %866 = vmatmul.bf16.gmra.mxu0 %v444
        %v867 = vpop.f32.mrf.mxu0
        %v868 = vadd.f32 %v363, %v867
        %v869 = vpop.f32.mrf.mxu0
        %v870 = vadd.f32 %v363, %v869
        %871 = vmatmul.bf16.gmra.mxu0 %v445
        %v872 = vpop.f32.mrf.mxu0
        %v873 = vadd.f32 %v363, %v872
        %v874 = vpop.f32.mrf.mxu0
        %v875 = vadd.f32 %v363, %v874
        %876 = vmatmul.bf16.gmra.mxu0 %v446
        %v877 = vpop.f32.mrf.mxu0
        %v878 = vadd.f32 %v363, %v877
        %v879 = vpop.f32.mrf.mxu0
        %v880 = vadd.f32 %v363, %v879
        %881 = vmatmul.bf16.gmra.mxu0 %v447
        %v882 = vpop.f32.mrf.mxu0
        %v883 = vadd.f32 %v363, %v882
        %v884 = vpop.f32.mrf.mxu0
        %v885 = vadd.f32 %v363, %v884
        %886 = vmatmul.bf16.gmra.mxu0 %v448
        %v887 = vpop.f32.mrf.mxu0
        %v888 = vadd.f32 %v363, %v887
        %v889 = vpop.f32.mrf.mxu0
        %v890 = vadd.f32 %v363, %v889
        %891 = vdwg.mxu0
        %892 = vmatpush.bf16.msra.mxu0 %v592
        %893 = vmatpush.bf16.msra.mxu0 %v588
        %894 = vmatpush.bf16.msra.mxu0 %v584
        %895 = vmatpush.bf16.msra.mxu0 %v580
        %896 = vmatpush.bf16.msra.mxu0 %v576
        %897 = vmatpush.bf16.msra.mxu0 %v572
        %898 = vmatpush.bf16.msra.mxu0 %v568
        %899 = vmatpush.bf16.msra.mxu0 %v564
        %900 = vmatmul.bf16.gmra.mxu0 %v433
        %v901 = vpop.f32.mrf.mxu0
        %v902 = vadd.f32 %v364, %v901
        %v903 = vpop.f32.mrf.mxu0
        %v904 = vadd.f32 %v364, %v903
        %905 = vmatmul.bf16.gmra.mxu0 %v434
        %v906 = vpop.f32.mrf.mxu0
        %v907 = vadd.f32 %v364, %v906
        %v908 = vpop.f32.mrf.mxu0
        %v909 = vadd.f32 %v364, %v908
        %910 = vmatmul.bf16.gmra.mxu0 %v435
        %v911 = vpop.f32.mrf.mxu0
        %v912 = vadd.f32 %v364, %v911
        %v913 = vpop.f32.mrf.mxu0
        %v914 = vadd.f32 %v364, %v913
        %915 = vmatmul.bf16.gmra.mxu0 %v436
        %v916 = vpop.f32.mrf.mxu0
        %v917 = vadd.f32 %v364, %v916
        %v918 = vpop.f32.mrf.mxu0
        %v919 = vadd.f32 %v364, %v918
        %920 = vmatmul.bf16.gmra.mxu0 %v437
        %v921 = vpop.f32.mrf.mxu0
        %v922 = vadd.f32 %v364, %v921
        %v923 = vpop.f32.mrf.mxu0
        %v924 = vadd.f32 %v364, %v923
        %925 = vmatmul.bf16.gmra.mxu0 %v438
        %v926 = vpop.f32.mrf.mxu0
        %v927 = vadd.f32 %v364, %v926
        %v928 = vpop.f32.mrf.mxu0
        %v929 = vadd.f32 %v364, %v928
        %930 = vmatmul.bf16.gmra.mxu0 %v439
        %v931 = vpop.f32.mrf.mxu0
        %v932 = vadd.f32 %v364, %v931
        %v933 = vpop.f32.mrf.mxu0
        %v934 = vadd.f32 %v364, %v933
        %935 = vmatmul.bf16.gmra.mxu0 %v440
        %v936 = vpop.f32.mrf.mxu0
        %v937 = vadd.f32 %v364, %v936
        %v938 = vpop.f32.mrf.mxu0
        %v939 = vadd.f32 %v364, %v938
        %940 = vmatmul.bf16.gmra.mxu0 %v441
        %v941 = vpop.f32.mrf.mxu0
        %v942 = vadd.f32 %v364, %v941
        %v943 = vpop.f32.mrf.mxu0
        %v944 = vadd.f32 %v364, %v943
        %945 = vmatmul.bf16.gmra.mxu0 %v442
        %v946 = vpop.f32.mrf.mxu0
        %v947 = vadd.f32 %v364, %v946
        %v948 = vpop.f32.mrf.mxu0
        %v949 = vadd.f32 %v364, %v948
        %950 = vmatmul.bf16.gmra.mxu0 %v443
        %v951 = vpop.f32.mrf.mxu0
        %v952 = vadd.f32 %v364, %v951
        %v953 = vpop.f32.mrf.mxu0
        %v954 = vadd.f32 %v364, %v953
        %955 = vmatmul.bf16.gmra.mxu0 %v444
        %v956 = vpop.f32.mrf.mxu0
        %v957 = vadd.f32 %v364, %v956
        %v958 = vpop.f32.mrf.mxu0
        %v959 = vadd.f32 %v364, %v958
        %960 = vmatmul.bf16.gmra.mxu0 %v445
        %v961 = vpop.f32.mrf.mxu0
        %v962 = vadd.f32 %v364, %v961
        %v963 = vpop.f32.mrf.mxu0
        %v964 = vadd.f32 %v364, %v963
        %965 = vmatmul.bf16.gmra.mxu0 %v446
        %v966 = vpop.f32.mrf.mxu0
        %v967 = vadd.f32 %v364, %v966
        %v968 = vpop.f32.mrf.mxu0
        %v969 = vadd.f32 %v364, %v968
        %970 = vmatmul.bf16.gmra.mxu0 %v447
        %v971 = vpop.f32.mrf.mxu0
        %v972 = vadd.f32 %v364, %v971
        %v973 = vpop.f32.mrf.mxu0
        %v974 = vadd.f32 %v364, %v973
        %975 = vmatmul.bf16.gmra.mxu0 %v448
        %v976 = vpop.f32.mrf.mxu0
        %v977 = vadd.f32 %v364, %v976
        %v978 = vpop.f32.mrf.mxu0
        %v979 = vadd.f32 %v364, %v978
        %980 = vdwg.mxu0
        %v981 = vmax.f32 %v635, 0.0
        %v982 = vmax.f32 %v724, 0.0
        %v983 = vmax.f32 %v813, 0.0
        %v984 = vmax.f32 %v902, 0.0
        %v985 = vmax.f32 %v637, 0.0
        %v986 = vmax.f32 %v726, 0.0
        %v987 = vmax.f32 %v815, 0.0
        %v988 = vmax.f32 %v904, 0.0
        %v989 = vmax.f32 %v640, 0.0
        %v990 = vmax.f32 %v729, 0.0
        %v991 = vmax.f32 %v818, 0.0
        %v992 = vmax.f32 %v907, 0.0
        %v993 = vmax.f32 %v642, 0.0
        %v994 = vmax.f32 %v731, 0.0
        %v995 = vmax.f32 %v820, 0.0
        %v996 = vmax.f32 %v909, 0.0
        %v997 = vmax.f32 %v645, 0.0
        %v998 = vmax.f32 %v734, 0.0
        %v999 = vmax.f32 %v823, 0.0
        %v1000 = vmax.f32 %v912, 0.0
        %v1001 = vmax.f32 %v647, 0.0
        %v1002 = vmax.f32 %v736, 0.0
        %v1003 = vmax.f32 %v825, 0.0
        %v1004 = vmax.f32 %v914, 0.0
        %v1005 = vmax.f32 %v650, 0.0
        %v1006 = vmax.f32 %v739, 0.0
        %v1007 = vmax.f32 %v828, 0.0
        %v1008 = vmax.f32 %v917, 0.0
        %v1009 = vmax.f32 %v652, 0.0
        %v1010 = vmax.f32 %v741, 0.0
        %v1011 = vmax.f32 %v830, 0.0
        %v1012 = vmax.f32 %v919, 0.0
        %v1013 = vmax.f32 %v655, 0.0
        %v1014 = vmax.f32 %v744, 0.0
        %v1015 = vmax.f32 %v833, 0.0
        %v1016 = vmax.f32 %v922, 0.0
        %v1017 = vmax.f32 %v657, 0.0
        %v1018 = vmax.f32 %v746, 0.0
        %v1019 = vmax.f32 %v835, 0.0
        %v1020 = vmax.f32 %v924, 0.0
        %v1021 = vmax.f32 %v660, 0.0
        %v1022 = vmax.f32 %v749, 0.0
        %v1023 = vmax.f32 %v838, 0.0
        %v1024 = vmax.f32 %v927, 0.0
        %v1025 = vmax.f32 %v662, 0.0
        %v1026 = vmax.f32 %v751, 0.0
        %v1027 = vmax.f32 %v840, 0.0
        %v1028 = vmax.f32 %v929, 0.0
        %v1029 = vmax.f32 %v665, 0.0
        %v1030 = vmax.f32 %v754, 0.0
        %v1031 = vmax.f32 %v843, 0.0
        %v1032 = vmax.f32 %v932, 0.0
        %v1033 = vmax.f32 %v667, 0.0
        %v1034 = vmax.f32 %v756, 0.0
        %v1035 = vmax.f32 %v845, 0.0
        %v1036 = vmax.f32 %v934, 0.0
        %v1037 = vmax.f32 %v670, 0.0
        %v1038 = vmax.f32 %v759, 0.0
        %v1039 = vmax.f32 %v848, 0.0
        %v1040 = vmax.f32 %v937, 0.0
        %v1041 = vmax.f32 %v672, 0.0
        %v1042 = vmax.f32 %v761, 0.0
        %v1043 = vmax.f32 %v850, 0.0
        %v1044 = vmax.f32 %v939, 0.0
        %v1045 = vmax.f32 %v675, 0.0
        %v1046 = vmax.f32 %v764, 0.0
        %v1047 = vmax.f32 %v853, 0.0
        %v1048 = vmax.f32 %v942, 0.0
        %v1049 = vmax.f32 %v677, 0.0
        %v1050 = vmax.f32 %v766, 0.0
        %v1051 = vmax.f32 %v855, 0.0
        %v1052 = vmax.f32 %v944, 0.0
        %v1053 = vmax.f32 %v680, 0.0
        %v1054 = vmax.f32 %v769, 0.0
        %v1055 = vmax.f32 %v858, 0.0
        %v1056 = vmax.f32 %v947, 0.0
        %v1057 = vmax.f32 %v682, 0.0
        %v1058 = vmax.f32 %v771, 0.0
        %v1059 = vmax.f32 %v860, 0.0
        %v1060 = vmax.f32 %v949, 0.0
        %v1061 = vmax.f32 %v685, 0.0
        %v1062 = vmax.f32 %v774, 0.0
        %v1063 = vmax.f32 %v863, 0.0
        %v1064 = vmax.f32 %v952, 0.0
        %v1065 = vmax.f32 %v687, 0.0
        %v1066 = vmax.f32 %v776, 0.0
        %v1067 = vmax.f32 %v865, 0.0
        %v1068 = vmax.f32 %v954, 0.0
        %v1069 = vmax.f32 %v690, 0.0
        %v1070 = vmax.f32 %v779, 0.0
        %v1071 = vmax.f32 %v868, 0.0
        %v1072 = vmax.f32 %v957, 0.0
        %v1073 = vmax.f32 %v692, 0.0
        %v1074 = vmax.f32 %v781, 0.0
        %v1075 = vmax.f32 %v870, 0.0
        %v1076 = vmax.f32 %v959, 0.0
        %v1077 = vmax.f32 %v695, 0.0
        %v1078 = vmax.f32 %v784, 0.0
        %v1079 = vmax.f32 %v873, 0.0
        %v1080 = vmax.f32 %v962, 0.0
        %v1081 = vmax.f32 %v697, 0.0
        %v1082 = vmax.f32 %v786, 0.0
        %v1083 = vmax.f32 %v875, 0.0
        %v1084 = vmax.f32 %v964, 0.0
        %v1085 = vmax.f32 %v700, 0.0
        %v1086 = vmax.f32 %v789, 0.0
        %v1087 = vmax.f32 %v878, 0.0
        %v1088 = vmax.f32 %v967, 0.0
        %v1089 = vmax.f32 %v702, 0.0
        %v1090 = vmax.f32 %v791, 0.0
        %v1091 = vmax.f32 %v880, 0.0
        %v1092 = vmax.f32 %v969, 0.0
        %v1093 = vmax.f32 %v705, 0.0
        %v1094 = vmax.f32 %v794, 0.0
        %v1095 = vmax.f32 %v883, 0.0
        %v1096 = vmax.f32 %v972, 0.0
        %v1097 = vmax.f32 %v707, 0.0
        %v1098 = vmax.f32 %v796, 0.0
        %v1099 = vmax.f32 %v885, 0.0
        %v1100 = vmax.f32 %v974, 0.0
        %v1101 = vmax.f32 %v710, 0.0
        %v1102 = vmax.f32 %v799, 0.0
        %v1103 = vmax.f32 %v888, 0.0
        %v1104 = vmax.f32 %v977, 0.0
        %v1105 = vmax.f32 %v712, 0.0
        %v1106 = vmax.f32 %v801, 0.0
        %v1107 = vmax.f32 %v890, 0.0
        %v1108 = vmax.f32 %v979, 0.0
        %v1109 = vpack.c.bf16 %v985, %v981
        %v1110 = vpack.c.bf16 %v986, %v982
        %v1111 = vpack.c.bf16 %v987, %v983
        %v1112 = vpack.c.bf16 %v988, %v984
        %v1113 = vpack.c.bf16 %v993, %v989
        %v1114 = vpack.c.bf16 %v994, %v990
        %v1115 = vpack.c.bf16 %v995, %v991
        %v1116 = vpack.c.bf16 %v996, %v992
        %v1117 = vpack.c.bf16 %v1001, %v997
        %v1118 = vpack.c.bf16 %v1002, %v998
        %v1119 = vpack.c.bf16 %v1003, %v999
        %v1120 = vpack.c.bf16 %v1004, %v1000
        %v1121 = vpack.c.bf16 %v1009, %v1005
        %v1122 = vpack.c.bf16 %v1010, %v1006
        %v1123 = vpack.c.bf16 %v1011, %v1007
        %v1124 = vpack.c.bf16 %v1012, %v1008
        %v1125 = vpack.c.bf16 %v1017, %v1013
        %v1126 = vpack.c.bf16 %v1018, %v1014
        %v1127 = vpack.c.bf16 %v1019, %v1015
        %v1128 = vpack.c.bf16 %v1020, %v1016
        %v1129 = vpack.c.bf16 %v1025, %v1021
        %v1130 = vpack.c.bf16 %v1026, %v1022
        %v1131 = vpack.c.bf16 %v1027, %v1023
        %v1132 = vpack.c.bf16 %v1028, %v1024
        %v1133 = vpack.c.bf16 %v1033, %v1029
        %v1134 = vpack.c.bf16 %v1034, %v1030
        %v1135 = vpack.c.bf16 %v1035, %v1031
        %v1136 = vpack.c.bf16 %v1036, %v1032
        %v1137 = vpack.c.bf16 %v1041, %v1037
        %v1138 = vpack.c.bf16 %v1042, %v1038
        %v1139 = vpack.c.bf16 %v1043, %v1039
        %v1140 = vpack.c.bf16 %v1044, %v1040
        %v1141 = vpack.c.bf16 %v1049, %v1045
        %v1142 = vpack.c.bf16 %v1050, %v1046
        %v1143 = vpack.c.bf16 %v1051, %v1047
        %v1144 = vpack.c.bf16 %v1052, %v1048
        %v1145 = vpack.c.bf16 %v1057, %v1053
        %v1146 = vpack.c.bf16 %v1058, %v1054
        %v1147 = vpack.c.bf16 %v1059, %v1055
        %v1148 = vpack.c.bf16 %v1060, %v1056
        %v1149 = vpack.c.bf16 %v1065, %v1061
        %v1150 = vpack.c.bf16 %v1066, %v1062
        %v1151 = vpack.c.bf16 %v1067, %v1063
        %v1152 = vpack.c.bf16 %v1068, %v1064
        %v1153 = vpack.c.bf16 %v1073, %v1069
        %v1154 = vpack.c.bf16 %v1074, %v1070
        %v1155 = vpack.c.bf16 %v1075, %v1071
        %v1156 = vpack.c.bf16 %v1076, %v1072
        %v1157 = vpack.c.bf16 %v1081, %v1077
        %v1158 = vpack.c.bf16 %v1082, %v1078
        %v1159 = vpack.c.bf16 %v1083, %v1079
        %v1160 = vpack.c.bf16 %v1084, %v1080
        %v1161 = vpack.c.bf16 %v1089, %v1085
        %v1162 = vpack.c.bf16 %v1090, %v1086
        %v1163 = vpack.c.bf16 %v1091, %v1087
        %v1164 = vpack.c.bf16 %v1092, %v1088
        %v1165 = vpack.c.bf16 %v1097, %v1093
        %v1166 = vpack.c.bf16 %v1098, %v1094
        %v1167 = vpack.c.bf16 %v1099, %v1095
        %v1168 = vpack.c.bf16 %v1100, %v1096
        %v1169 = vpack.c.bf16 %v1105, %v1101
        %v1170 = vpack.c.bf16 %v1106, %v1102
        %v1171 = vpack.c.bf16 %v1107, %v1103
        %v1172 = vpack.c.bf16 %v1108, %v1104
        %v1173 = vld [vmem:[#allocation8] sm:$0xf]
        %v1174 = vld [vmem:[#allocation8 + $0x4] sm:$0xf]
        %v1175 = vld [vmem:[#allocation8 + $0x8] sm:$0xf]
        %v1176 = vld [vmem:[#allocation8 + $0xc] sm:$0xf]
        %v1177 = vld [vmem:[#allocation8 + $0x10] sm:$0xf]
        %v1178 = vld [vmem:[#allocation8 + $0x14] sm:$0xf]
        %v1179 = vld [vmem:[#allocation8 + $0x18] sm:$0xf]
        %v1180 = vld [vmem:[#allocation8 + $0x1c] sm:$0xf]
        %v1181 = vld [vmem:[#allocation8 + $0x20] sm:$0xf]
        %v1182 = vld [vmem:[#allocation8 + $0x24] sm:$0xf]
        %v1183 = vld [vmem:[#allocation8 + $0x28] sm:$0xf]
        %v1184 = vld [vmem:[#allocation8 + $0x2c] sm:$0xf]
        %v1185 = vld [vmem:[#allocation8 + $0x30] sm:$0xf]
        %v1186 = vld [vmem:[#allocation8 + $0x34] sm:$0xf]
        %v1187 = vld [vmem:[#allocation8 + $0x38] sm:$0xf]
        %v1188 = vld [vmem:[#allocation8 + $0x3c] sm:$0xf]
        %v1189 = vld [vmem:[#allocation8 + $0x40] sm:$0xf]
        %v1190 = vld [vmem:[#allocation8 + $0x44] sm:$0xf]
        %v1191 = vld [vmem:[#allocation8 + $0x48] sm:$0xf]
        %v1192 = vld [vmem:[#allocation8 + $0x4c] sm:$0xf]
        %v1193 = vld [vmem:[#allocation8 + $0x50] sm:$0xf]
        %v1194 = vld [vmem:[#allocation8 + $0x54] sm:$0xf]
        %v1195 = vld [vmem:[#allocation8 + $0x58] sm:$0xf]
        %v1196 = vld [vmem:[#allocation8 + $0x5c] sm:$0xf]
        %v1197 = vld [vmem:[#allocation8 + $0x60] sm:$0xf]
        %v1198 = vld [vmem:[#allocation8 + $0x64] sm:$0xf]
        %v1199 = vld [vmem:[#allocation8 + $0x68] sm:$0xf]
        %v1200 = vld [vmem:[#allocation8 + $0x6c] sm:$0xf]
        %v1201 = vld [vmem:[#allocation8 + $0x70] sm:$0xf]
        %v1202 = vld [vmem:[#allocation8 + $0x74] sm:$0xf]
        %v1203 = vld [vmem:[#allocation8 + $0x78] sm:$0xf]
        %v1204 = vld [vmem:[#allocation8 + $0x7c] sm:$0xf]
        %v1205 = vld [vmem:[#allocation8 + $0x80] sm:$0xf]
        %v1206 = vld [vmem:[#allocation8 + $0x84] sm:$0xf]
        %v1207 = vld [vmem:[#allocation8 + $0x88] sm:$0xf]
        %v1208 = vld [vmem:[#allocation8 + $0x8c] sm:$0xf]
        %v1209 = vld [vmem:[#allocation8 + $0x90] sm:$0xf]
        %v1210 = vld [vmem:[#allocation8 + $0x94] sm:$0xf]
        %v1211 = vld [vmem:[#allocation8 + $0x98] sm:$0xf]
        %v1212 = vld [vmem:[#allocation8 + $0x9c] sm:$0xf]
        %v1213 = vld [vmem:[#allocation8 + $0xa0] sm:$0xf]
        %v1214 = vld [vmem:[#allocation8 + $0xa4] sm:$0xf]
        %v1215 = vld [vmem:[#allocation8 + $0xa8] sm:$0xf]
        %v1216 = vld [vmem:[#allocation8 + $0xac] sm:$0xf]
        %v1217 = vld [vmem:[#allocation8 + $0xb0] sm:$0xf]
        %v1218 = vld [vmem:[#allocation8 + $0xb4] sm:$0xf]
        %v1219 = vld [vmem:[#allocation8 + $0xb8] sm:$0xf]
        %v1220 = vld [vmem:[#allocation8 + $0xbc] sm:$0xf]
        %v1221 = vld [vmem:[#allocation8 + $0xc0] sm:$0xf]
        %v1222 = vld [vmem:[#allocation8 + $0xc4] sm:$0xf]
        %v1223 = vld [vmem:[#allocation8 + $0xc8] sm:$0xf]
        %v1224 = vld [vmem:[#allocation8 + $0xcc] sm:$0xf]
        %v1225 = vld [vmem:[#allocation8 + $0xd0] sm:$0xf]
        %v1226 = vld [vmem:[#allocation8 + $0xd4] sm:$0xf]
        %v1227 = vld [vmem:[#allocation8 + $0xd8] sm:$0xf]
        %v1228 = vld [vmem:[#allocation8 + $0xdc] sm:$0xf]
        %v1229 = vld [vmem:[#allocation8 + $0xe0] sm:$0xf]
        %v1230 = vld [vmem:[#allocation8 + $0xe4] sm:$0xf]
        %v1231 = vld [vmem:[#allocation8 + $0xe8] sm:$0xf]
        %v1232 = vld [vmem:[#allocation8 + $0xec] sm:$0xf]
        %v1233 = vld [vmem:[#allocation8 + $0xf0] sm:$0xf]
        %v1234 = vld [vmem:[#allocation8 + $0xf4] sm:$0xf]
        %v1235 = vld [vmem:[#allocation8 + $0xf8] sm:$0xf]
        %v1236 = vld [vmem:[#allocation8 + $0xfc] sm:$0xf]
        %v1237 = vld [vmem:[%s4] sm:$0x1]
        %v1239 = vperm.slane %v1237, 0
        %v1305 = vunpack.c.l.b16 %v1173
        %v1306 = vunpack.c.l.b16 %v1174
        %v1307 = vunpack.c.l.b16 %v1175
        %v1308 = vunpack.c.l.b16 %v1176
        %v1309 = vunpack.c.l.b16 %v1177
        %v1310 = vunpack.c.l.b16 %v1178
        %v1311 = vunpack.c.l.b16 %v1179
        %v1312 = vunpack.c.l.b16 %v1180
        %v1313 = vunpack.c.l.b16 %v1181
        %v1314 = vunpack.c.l.b16 %v1182
        %v1315 = vunpack.c.l.b16 %v1183
        %v1316 = vunpack.c.l.b16 %v1184
        %v1317 = vunpack.c.l.b16 %v1185
        %v1318 = vunpack.c.l.b16 %v1186
        %v1319 = vunpack.c.l.b16 %v1187
        %v1320 = vunpack.c.l.b16 %v1188
        %v1321 = vunpack.c.l.b16 %v1189
        %v1322 = vunpack.c.l.b16 %v1190
        %v1323 = vunpack.c.l.b16 %v1191
        %v1324 = vunpack.c.l.b16 %v1192
        %v1325 = vunpack.c.l.b16 %v1193
        %v1326 = vunpack.c.l.b16 %v1194
        %v1327 = vunpack.c.l.b16 %v1195
        %v1328 = vunpack.c.l.b16 %v1196
        %v1329 = vunpack.c.l.b16 %v1197
        %v1330 = vunpack.c.l.b16 %v1198
        %v1331 = vunpack.c.l.b16 %v1199
        %v1332 = vunpack.c.l.b16 %v1200
        %v1333 = vunpack.c.l.b16 %v1201
        %v1334 = vunpack.c.l.b16 %v1202
        %v1335 = vunpack.c.l.b16 %v1203
        %v1336 = vunpack.c.l.b16 %v1204
        %v1337 = vunpack.c.l.b16 %v1205
        %v1338 = vunpack.c.l.b16 %v1206
        %v1339 = vunpack.c.l.b16 %v1207
        %v1340 = vunpack.c.l.b16 %v1208
        %v1341 = vunpack.c.l.b16 %v1209
        %v1342 = vunpack.c.l.b16 %v1210
        %v1343 = vunpack.c.l.b16 %v1211
        %v1344 = vunpack.c.l.b16 %v1212
        %v1345 = vunpack.c.l.b16 %v1213
        %v1346 = vunpack.c.l.b16 %v1214
        %v1347 = vunpack.c.l.b16 %v1215
        %v1348 = vunpack.c.l.b16 %v1216
        %v1349 = vunpack.c.l.b16 %v1217
        %v1350 = vunpack.c.l.b16 %v1218
        %v1351 = vunpack.c.l.b16 %v1219
        %v1352 = vunpack.c.l.b16 %v1220
        %v1353 = vunpack.c.l.b16 %v1221
        %v1354 = vunpack.c.l.b16 %v1222
        %v1355 = vunpack.c.l.b16 %v1223
        %v1356 = vunpack.c.l.b16 %v1224
        %v1357 = vunpack.c.l.b16 %v1225
        %v1358 = vunpack.c.l.b16 %v1226
        %v1359 = vunpack.c.l.b16 %v1227
        %v1360 = vunpack.c.l.b16 %v1228
        %v1361 = vunpack.c.l.b16 %v1229
        %v1362 = vunpack.c.l.b16 %v1230
        %v1363 = vunpack.c.l.b16 %v1231
        %v1364 = vunpack.c.l.b16 %v1232
        %v1365 = vunpack.c.l.b16 %v1233
        %v1366 = vunpack.c.l.b16 %v1234
        %v1367 = vunpack.c.l.b16 %v1235
        %v1368 = vunpack.c.l.b16 %v1236
        %v1369 = vpack.c.b16 %v1306, %v1305
        %v1370 = vpack.c.b16 %v1308, %v1307
        %v1371 = vpack.c.b16 %v1310, %v1309
        %v1372 = vpack.c.b16 %v1312, %v1311
        %v1373 = vpack.c.b16 %v1314, %v1313
        %v1374 = vpack.c.b16 %v1316, %v1315
        %v1375 = vpack.c.b16 %v1318, %v1317
        %v1376 = vpack.c.b16 %v1320, %v1319
        %v1377 = vpack.c.b16 %v1322, %v1321
        %v1378 = vpack.c.b16 %v1324, %v1323
        %v1379 = vpack.c.b16 %v1326, %v1325
        %v1380 = vpack.c.b16 %v1328, %v1327
        %v1381 = vpack.c.b16 %v1330, %v1329
        %v1382 = vpack.c.b16 %v1332, %v1331
        %v1383 = vpack.c.b16 %v1334, %v1333
        %v1384 = vpack.c.b16 %v1336, %v1335
        %v1385 = vpack.c.b16 %v1338, %v1337
        %v1386 = vpack.c.b16 %v1340, %v1339
        %v1387 = vpack.c.b16 %v1342, %v1341
        %v1388 = vpack.c.b16 %v1344, %v1343
        %v1389 = vpack.c.b16 %v1346, %v1345
        %v1390 = vpack.c.b16 %v1348, %v1347
        %v1391 = vpack.c.b16 %v1350, %v1349
        %v1392 = vpack.c.b16 %v1352, %v1351
        %v1393 = vpack.c.b16 %v1354, %v1353
        %v1394 = vpack.c.b16 %v1356, %v1355
        %v1395 = vpack.c.b16 %v1358, %v1357
        %v1396 = vpack.c.b16 %v1360, %v1359
        %v1397 = vpack.c.b16 %v1362, %v1361
        %v1398 = vpack.c.b16 %v1364, %v1363
        %v1399 = vpack.c.b16 %v1366, %v1365
        %v1400 = vpack.c.b16 %v1368, %v1367
        %1433 = vmatpush.bf16.msra.mxu0 %v1376
        %1434 = vmatpush.bf16.msra.mxu0 %v1375
        %1435 = vmatpush.bf16.msra.mxu0 %v1374
        %1436 = vmatpush.bf16.msra.mxu0 %v1373
        %1437 = vmatpush.bf16.msra.mxu0 %v1372
        %1438 = vmatpush.bf16.msra.mxu0 %v1371
        %1439 = vmatpush.bf16.msra.mxu0 %v1370
        %1440 = vmatpush.bf16.msra.mxu0 %v1369
        %1441 = vmatmul.bf16.gmra.mxu0 %v1109
        %v1442 = vpop.f32.mrf.mxu0
        %v1443 = vadd.f32 %v1239, %v1442
        %v1444 = vpop.f32.mrf.mxu0
        %v1445 = vadd.f32 %v1239, %v1444
        %1446 = vmatmul.bf16.gmra.mxu0 %v1113
        %v1447 = vpop.f32.mrf.mxu0
        %v1448 = vadd.f32 %v1239, %v1447
        %v1449 = vpop.f32.mrf.mxu0
        %v1450 = vadd.f32 %v1239, %v1449
        %1451 = vmatmul.bf16.gmra.mxu0 %v1117
        %v1452 = vpop.f32.mrf.mxu0
        %v1453 = vadd.f32 %v1239, %v1452
        %v1454 = vpop.f32.mrf.mxu0
        %v1455 = vadd.f32 %v1239, %v1454
        %1456 = vmatmul.bf16.gmra.mxu0 %v1121
        %v1457 = vpop.f32.mrf.mxu0
        %v1458 = vadd.f32 %v1239, %v1457
        %v1459 = vpop.f32.mrf.mxu0
        %v1460 = vadd.f32 %v1239, %v1459
        %1461 = vmatmul.bf16.gmra.mxu0 %v1125
        %v1462 = vpop.f32.mrf.mxu0
        %v1463 = vadd.f32 %v1239, %v1462
        %v1464 = vpop.f32.mrf.mxu0
        %v1465 = vadd.f32 %v1239, %v1464
        %1466 = vmatmul.bf16.gmra.mxu0 %v1129
        %v1467 = vpop.f32.mrf.mxu0
        %v1468 = vadd.f32 %v1239, %v1467
        %v1469 = vpop.f32.mrf.mxu0
        %v1470 = vadd.f32 %v1239, %v1469
        %1471 = vmatmul.bf16.gmra.mxu0 %v1133
        %v1472 = vpop.f32.mrf.mxu0
        %v1473 = vadd.f32 %v1239, %v1472
        %v1474 = vpop.f32.mrf.mxu0
        %v1475 = vadd.f32 %v1239, %v1474
        %1476 = vmatmul.bf16.gmra.mxu0 %v1137
        %v1477 = vpop.f32.mrf.mxu0
        %v1478 = vadd.f32 %v1239, %v1477
        %v1479 = vpop.f32.mrf.mxu0
        %v1480 = vadd.f32 %v1239, %v1479
        %1481 = vmatmul.bf16.gmra.mxu0 %v1141
        %v1482 = vpop.f32.mrf.mxu0
        %v1483 = vadd.f32 %v1239, %v1482
        %v1484 = vpop.f32.mrf.mxu0
        %v1485 = vadd.f32 %v1239, %v1484
        %1486 = vmatmul.bf16.gmra.mxu0 %v1145
        %v1487 = vpop.f32.mrf.mxu0
        %v1488 = vadd.f32 %v1239, %v1487
        %v1489 = vpop.f32.mrf.mxu0
        %v1490 = vadd.f32 %v1239, %v1489
        %1491 = vmatmul.bf16.gmra.mxu0 %v1149
        %v1492 = vpop.f32.mrf.mxu0
        %v1493 = vadd.f32 %v1239, %v1492
        %v1494 = vpop.f32.mrf.mxu0
        %v1495 = vadd.f32 %v1239, %v1494
        %1496 = vmatmul.bf16.gmra.mxu0 %v1153
        %v1497 = vpop.f32.mrf.mxu0
        %v1498 = vadd.f32 %v1239, %v1497
        %v1499 = vpop.f32.mrf.mxu0
        %v1500 = vadd.f32 %v1239, %v1499
        %1501 = vmatmul.bf16.gmra.mxu0 %v1157
        %v1502 = vpop.f32.mrf.mxu0
        %v1503 = vadd.f32 %v1239, %v1502
        %v1504 = vpop.f32.mrf.mxu0
        %v1505 = vadd.f32 %v1239, %v1504
        %1506 = vmatmul.bf16.gmra.mxu0 %v1161
        %v1507 = vpop.f32.mrf.mxu0
        %v1508 = vadd.f32 %v1239, %v1507
        %v1509 = vpop.f32.mrf.mxu0
        %v1510 = vadd.f32 %v1239, %v1509
        %1511 = vmatmul.bf16.gmra.mxu0 %v1165
        %v1512 = vpop.f32.mrf.mxu0
        %v1513 = vadd.f32 %v1239, %v1512
        %v1514 = vpop.f32.mrf.mxu0
        %v1515 = vadd.f32 %v1239, %v1514
        %1516 = vmatmul.bf16.gmra.mxu0 %v1169
        %v1517 = vpop.f32.mrf.mxu0
        %v1518 = vadd.f32 %v1239, %v1517
        %v1519 = vpop.f32.mrf.mxu0
        %v1520 = vadd.f32 %v1239, %v1519
        %1521 = vdwg.mxu0
        %1522 = vmatpush.bf16.msra.mxu0 %v1384
        %1523 = vmatpush.bf16.msra.mxu0 %v1383
        %1524 = vmatpush.bf16.msra.mxu0 %v1382
        %1525 = vmatpush.bf16.msra.mxu0 %v1381
        %1526 = vmatpush.bf16.msra.mxu0 %v1380
        %1527 = vmatpush.bf16.msra.mxu0 %v1379
        %1528 = vmatpush.bf16.msra.mxu0 %v1378
        %1529 = vmatpush.bf16.msra.mxu0 %v1377
        %1530 = vmatmul.bf16.gmra.mxu0 %v1110
        %v1531 = vpop.f32.mrf.mxu0
        %v1532 = vadd.f32 %v1443, %v1531
        %v1533 = vpop.f32.mrf.mxu0
        %v1534 = vadd.f32 %v1445, %v1533
        %1535 = vmatmul.bf16.gmra.mxu0 %v1114
        %v1536 = vpop.f32.mrf.mxu0
        %v1537 = vadd.f32 %v1448, %v1536
        %v1538 = vpop.f32.mrf.mxu0
        %v1539 = vadd.f32 %v1450, %v1538
        %1540 = vmatmul.bf16.gmra.mxu0 %v1118
        %v1541 = vpop.f32.mrf.mxu0
        %v1542 = vadd.f32 %v1453, %v1541
        %v1543 = vpop.f32.mrf.mxu0
        %v1544 = vadd.f32 %v1455, %v1543
        %1545 = vmatmul.bf16.gmra.mxu0 %v1122
        %v1546 = vpop.f32.mrf.mxu0
        %v1547 = vadd.f32 %v1458, %v1546
        %v1548 = vpop.f32.mrf.mxu0
        %v1549 = vadd.f32 %v1460, %v1548
        %1550 = vmatmul.bf16.gmra.mxu0 %v1126
        %v1551 = vpop.f32.mrf.mxu0
        %v1552 = vadd.f32 %v1463, %v1551
        %v1553 = vpop.f32.mrf.mxu0
        %v1554 = vadd.f32 %v1465, %v1553
        %1555 = vmatmul.bf16.gmra.mxu0 %v1130
        %v1556 = vpop.f32.mrf.mxu0
        %v1557 = vadd.f32 %v1468, %v1556
        %v1558 = vpop.f32.mrf.mxu0
        %v1559 = vadd.f32 %v1470, %v1558
        %1560 = vmatmul.bf16.gmra.mxu0 %v1134
        %v1561 = vpop.f32.mrf.mxu0
        %v1562 = vadd.f32 %v1473, %v1561
        %v1563 = vpop.f32.mrf.mxu0
        %v1564 = vadd.f32 %v1475, %v1563
        %1565 = vmatmul.bf16.gmra.mxu0 %v1138
        %v1566 = vpop.f32.mrf.mxu0
        %v1567 = vadd.f32 %v1478, %v1566
        %v1568 = vpop.f32.mrf.mxu0
        %v1569 = vadd.f32 %v1480, %v1568
        %1570 = vmatmul.bf16.gmra.mxu0 %v1142
        %v1571 = vpop.f32.mrf.mxu0
        %v1572 = vadd.f32 %v1483, %v1571
        %v1573 = vpop.f32.mrf.mxu0
        %v1574 = vadd.f32 %v1485, %v1573
        %1575 = vmatmul.bf16.gmra.mxu0 %v1146
        %v1576 = vpop.f32.mrf.mxu0
        %v1577 = vadd.f32 %v1488, %v1576
        %v1578 = vpop.f32.mrf.mxu0
        %v1579 = vadd.f32 %v1490, %v1578
        %1580 = vmatmul.bf16.gmra.mxu0 %v1150
        %v1581 = vpop.f32.mrf.mxu0
        %v1582 = vadd.f32 %v1493, %v1581
        %v1583 = vpop.f32.mrf.mxu0
        %v1584 = vadd.f32 %v1495, %v1583
        %1585 = vmatmul.bf16.gmra.mxu0 %v1154
        %v1586 = vpop.f32.mrf.mxu0
        %v1587 = vadd.f32 %v1498, %v1586
        %v1588 = vpop.f32.mrf.mxu0
        %v1589 = vadd.f32 %v1500, %v1588
        %1590 = vmatmul.bf16.gmra.mxu0 %v1158
        %v1591 = vpop.f32.mrf.mxu0
        %v1592 = vadd.f32 %v1503, %v1591
        %v1593 = vpop.f32.mrf.mxu0
        %v1594 = vadd.f32 %v1505, %v1593
        %1595 = vmatmul.bf16.gmra.mxu0 %v1162
        %v1596 = vpop.f32.mrf.mxu0
        %v1597 = vadd.f32 %v1508, %v1596
        %v1598 = vpop.f32.mrf.mxu0
        %v1599 = vadd.f32 %v1510, %v1598
        %1600 = vmatmul.bf16.gmra.mxu0 %v1166
        %v1601 = vpop.f32.mrf.mxu0
        %v1602 = vadd.f32 %v1513, %v1601
        %v1603 = vpop.f32.mrf.mxu0
        %v1604 = vadd.f32 %v1515, %v1603
        %1605 = vmatmul.bf16.gmra.mxu0 %v1170
        %v1606 = vpop.f32.mrf.mxu0
        %v1607 = vadd.f32 %v1518, %v1606
        %v1608 = vpop.f32.mrf.mxu0
        %v1609 = vadd.f32 %v1520, %v1608
        %1610 = vdwg.mxu0
        %1611 = vmatpush.bf16.msra.mxu0 %v1392
        %1612 = vmatpush.bf16.msra.mxu0 %v1391
        %1613 = vmatpush.bf16.msra.mxu0 %v1390
        %1614 = vmatpush.bf16.msra.mxu0 %v1389
        %1615 = vmatpush.bf16.msra.mxu0 %v1388
        %1616 = vmatpush.bf16.msra.mxu0 %v1387
        %1617 = vmatpush.bf16.msra.mxu0 %v1386
        %1618 = vmatpush.bf16.msra.mxu0 %v1385
        %1619 = vmatmul.bf16.gmra.mxu0 %v1111
        %v1620 = vpop.f32.mrf.mxu0
        %v1621 = vadd.f32 %v1532, %v1620
        %v1622 = vpop.f32.mrf.mxu0
        %v1623 = vadd.f32 %v1534, %v1622
        %1624 = vmatmul.bf16.gmra.mxu0 %v1115
        %v1625 = vpop.f32.mrf.mxu0
        %v1626 = vadd.f32 %v1537, %v1625
        %v1627 = vpop.f32.mrf.mxu0
        %v1628 = vadd.f32 %v1539, %v1627
        %1629 = vmatmul.bf16.gmra.mxu0 %v1119
        %v1630 = vpop.f32.mrf.mxu0
        %v1631 = vadd.f32 %v1542, %v1630
        %v1632 = vpop.f32.mrf.mxu0
        %v1633 = vadd.f32 %v1544, %v1632
        %1634 = vmatmul.bf16.gmra.mxu0 %v1123
        %v1635 = vpop.f32.mrf.mxu0
        %v1636 = vadd.f32 %v1547, %v1635
        %v1637 = vpop.f32.mrf.mxu0
        %v1638 = vadd.f32 %v1549, %v1637
        %1639 = vmatmul.bf16.gmra.mxu0 %v1127
        %v1640 = vpop.f32.mrf.mxu0
        %v1641 = vadd.f32 %v1552, %v1640
        %v1642 = vpop.f32.mrf.mxu0
        %v1643 = vadd.f32 %v1554, %v1642
        %1644 = vmatmul.bf16.gmra.mxu0 %v1131
        %v1645 = vpop.f32.mrf.mxu0
        %v1646 = vadd.f32 %v1557, %v1645
        %v1647 = vpop.f32.mrf.mxu0
        %v1648 = vadd.f32 %v1559, %v1647
        %1649 = vmatmul.bf16.gmra.mxu0 %v1135
        %v1650 = vpop.f32.mrf.mxu0
        %v1651 = vadd.f32 %v1562, %v1650
        %v1652 = vpop.f32.mrf.mxu0
        %v1653 = vadd.f32 %v1564, %v1652
        %1654 = vmatmul.bf16.gmra.mxu0 %v1139
        %v1655 = vpop.f32.mrf.mxu0
        %v1656 = vadd.f32 %v1567, %v1655
        %v1657 = vpop.f32.mrf.mxu0
        %v1658 = vadd.f32 %v1569, %v1657
        %1659 = vmatmul.bf16.gmra.mxu0 %v1143
        %v1660 = vpop.f32.mrf.mxu0
        %v1661 = vadd.f32 %v1572, %v1660
        %v1662 = vpop.f32.mrf.mxu0
        %v1663 = vadd.f32 %v1574, %v1662
        %1664 = vmatmul.bf16.gmra.mxu0 %v1147
        %v1665 = vpop.f32.mrf.mxu0
        %v1666 = vadd.f32 %v1577, %v1665
        %v1667 = vpop.f32.mrf.mxu0
        %v1668 = vadd.f32 %v1579, %v1667
        %1669 = vmatmul.bf16.gmra.mxu0 %v1151
        %v1670 = vpop.f32.mrf.mxu0
        %v1671 = vadd.f32 %v1582, %v1670
        %v1672 = vpop.f32.mrf.mxu0
        %v1673 = vadd.f32 %v1584, %v1672
        %1674 = vmatmul.bf16.gmra.mxu0 %v1155
        %v1675 = vpop.f32.mrf.mxu0
        %v1676 = vadd.f32 %v1587, %v1675
        %v1677 = vpop.f32.mrf.mxu0
        %v1678 = vadd.f32 %v1589, %v1677
        %1679 = vmatmul.bf16.gmra.mxu0 %v1159
        %v1680 = vpop.f32.mrf.mxu0
        %v1681 = vadd.f32 %v1592, %v1680
        %v1682 = vpop.f32.mrf.mxu0
        %v1683 = vadd.f32 %v1594, %v1682
        %1684 = vmatmul.bf16.gmra.mxu0 %v1163
        %v1685 = vpop.f32.mrf.mxu0
        %v1686 = vadd.f32 %v1597, %v1685
        %v1687 = vpop.f32.mrf.mxu0
        %v1688 = vadd.f32 %v1599, %v1687
        %1689 = vmatmul.bf16.gmra.mxu0 %v1167
        %v1690 = vpop.f32.mrf.mxu0
        %v1691 = vadd.f32 %v1602, %v1690
        %v1692 = vpop.f32.mrf.mxu0
        %v1693 = vadd.f32 %v1604, %v1692
        %1694 = vmatmul.bf16.gmra.mxu0 %v1171
        %v1695 = vpop.f32.mrf.mxu0
        %v1696 = vadd.f32 %v1607, %v1695
        %v1697 = vpop.f32.mrf.mxu0
        %v1698 = vadd.f32 %v1609, %v1697
        %1699 = vdwg.mxu0
        %1700 = vmatpush.bf16.msra.mxu0 %v1400
        %1701 = vmatpush.bf16.msra.mxu0 %v1399
        %1702 = vmatpush.bf16.msra.mxu0 %v1398
        %1703 = vmatpush.bf16.msra.mxu0 %v1397
        %1704 = vmatpush.bf16.msra.mxu0 %v1396
        %1705 = vmatpush.bf16.msra.mxu0 %v1395
        %1706 = vmatpush.bf16.msra.mxu0 %v1394
        %1707 = vmatpush.bf16.msra.mxu0 %v1393
        %1708 = vmatmul.bf16.gmra.mxu0 %v1112
        %v1709 = vpop.f32.mrf.mxu0
        %v1710 = vadd.f32 %v1621, %v1709
        %v1711 = vpop.f32.mrf.mxu0
        %v1712 = vadd.f32 %v1623, %v1711
        %1713 = vmatmul.bf16.gmra.mxu0 %v1116
        %v1714 = vpop.f32.mrf.mxu0
        %v1715 = vadd.f32 %v1626, %v1714
        %v1716 = vpop.f32.mrf.mxu0
        %v1717 = vadd.f32 %v1628, %v1716
        %1718 = vmatmul.bf16.gmra.mxu0 %v1120
        %v1719 = vpop.f32.mrf.mxu0
        %v1720 = vadd.f32 %v1631, %v1719
        %v1721 = vpop.f32.mrf.mxu0
        %v1722 = vadd.f32 %v1633, %v1721
        %1723 = vmatmul.bf16.gmra.mxu0 %v1124
        %v1724 = vpop.f32.mrf.mxu0
        %v1725 = vadd.f32 %v1636, %v1724
        %v1726 = vpop.f32.mrf.mxu0
        %v1727 = vadd.f32 %v1638, %v1726
        %1728 = vmatmul.bf16.gmra.mxu0 %v1128
        %v1729 = vpop.f32.mrf.mxu0
        %v1730 = vadd.f32 %v1641, %v1729
        %v1731 = vpop.f32.mrf.mxu0
        %v1732 = vadd.f32 %v1643, %v1731
        %1733 = vmatmul.bf16.gmra.mxu0 %v1132
        %v1734 = vpop.f32.mrf.mxu0
        %v1735 = vadd.f32 %v1646, %v1734
        %v1736 = vpop.f32.mrf.mxu0
        %v1737 = vadd.f32 %v1648, %v1736
        %1738 = vmatmul.bf16.gmra.mxu0 %v1136
        %v1739 = vpop.f32.mrf.mxu0
        %v1740 = vadd.f32 %v1651, %v1739
        %v1741 = vpop.f32.mrf.mxu0
        %v1742 = vadd.f32 %v1653, %v1741
        %1743 = vmatmul.bf16.gmra.mxu0 %v1140
        %v1744 = vpop.f32.mrf.mxu0
        %v1745 = vadd.f32 %v1656, %v1744
        %v1746 = vpop.f32.mrf.mxu0
        %v1747 = vadd.f32 %v1658, %v1746
        %1748 = vmatmul.bf16.gmra.mxu0 %v1144
        %v1749 = vpop.f32.mrf.mxu0
        %v1750 = vadd.f32 %v1661, %v1749
        %v1751 = vpop.f32.mrf.mxu0
        %v1752 = vadd.f32 %v1663, %v1751
        %1753 = vmatmul.bf16.gmra.mxu0 %v1148
        %v1754 = vpop.f32.mrf.mxu0
        %v1755 = vadd.f32 %v1666, %v1754
        %v1756 = vpop.f32.mrf.mxu0
        %v1757 = vadd.f32 %v1668, %v1756
        %1758 = vmatmul.bf16.gmra.mxu0 %v1152
        %v1759 = vpop.f32.mrf.mxu0
        %v1760 = vadd.f32 %v1671, %v1759
        %v1761 = vpop.f32.mrf.mxu0
        %v1762 = vadd.f32 %v1673, %v1761
        %1763 = vmatmul.bf16.gmra.mxu0 %v1156
        %v1764 = vpop.f32.mrf.mxu0
        %v1765 = vadd.f32 %v1676, %v1764
        %v1766 = vpop.f32.mrf.mxu0
        %v1767 = vadd.f32 %v1678, %v1766
        %1768 = vmatmul.bf16.gmra.mxu0 %v1160
        %v1769 = vpop.f32.mrf.mxu0
        %v1770 = vadd.f32 %v1681, %v1769
        %v1771 = vpop.f32.mrf.mxu0
        %v1772 = vadd.f32 %v1683, %v1771
        %1773 = vmatmul.bf16.gmra.mxu0 %v1164
        %v1774 = vpop.f32.mrf.mxu0
        %v1775 = vadd.f32 %v1686, %v1774
        %v1776 = vpop.f32.mrf.mxu0
        %v1777 = vadd.f32 %v1688, %v1776
        %1778 = vmatmul.bf16.gmra.mxu0 %v1168
        %v1779 = vpop.f32.mrf.mxu0
        %v1780 = vadd.f32 %v1691, %v1779
        %v1781 = vpop.f32.mrf.mxu0
        %v1782 = vadd.f32 %v1693, %v1781
        %1783 = vmatmul.bf16.gmra.mxu0 %v1172
        %v1784 = vpop.f32.mrf.mxu0
        %v1785 = vadd.f32 %v1696, %v1784
        %v1786 = vpop.f32.mrf.mxu0
        %v1787 = vadd.f32 %v1698, %v1786
        %1788 = vdwg.mxu0
        %1789 = vst [vmem:[%s292] sm:$0xff] %v1710
        %1790 = vst [vmem:[%s292 + $0x8] sm:$0xff] %v1712
        %1791 = vst [vmem:[%s292 + $0x10] sm:$0xff] %v1715
        %1792 = vst [vmem:[%s292 + $0x18] sm:$0xff] %v1717
        %1793 = vst [vmem:[%s292 + $0x20] sm:$0xff] %v1720
        %1794 = vst [vmem:[%s292 + $0x28] sm:$0xff] %v1722
        %1795 = vst [vmem:[%s292 + $0x30] sm:$0xff] %v1725
        %1796 = vst [vmem:[%s292 + $0x38] sm:$0xff] %v1727
        %1797 = vst [vmem:[%s292 + $0x40] sm:$0xff] %v1730
        %1798 = vst [vmem:[%s292 + $0x48] sm:$0xff] %v1732
        %1799 = vst [vmem:[%s292 + $0x50] sm:$0xff] %v1735
        %1800 = vst [vmem:[%s292 + $0x58] sm:$0xff] %v1737
        %1801 = vst [vmem:[%s292 + $0x60] sm:$0xff] %v1740
        %1802 = vst [vmem:[%s292 + $0x68] sm:$0xff] %v1742
        %1803 = vst [vmem:[%s292 + $0x70] sm:$0xff] %v1745
        %1804 = vst [vmem:[%s292 + $0x78] sm:$0xff] %v1747
        %1805 = vst [vmem:[%s292 + $0x80] sm:$0xff] %v1750
        %1806 = vst [vmem:[%s292 + $0x88] sm:$0xff] %v1752
        %1807 = vst [vmem:[%s292 + $0x90] sm:$0xff] %v1755
        %1808 = vst [vmem:[%s292 + $0x98] sm:$0xff] %v1757
        %1809 = vst [vmem:[%s292 + $0xa0] sm:$0xff] %v1760
        %1810 = vst [vmem:[%s292 + $0xa8] sm:$0xff] %v1762
        %1811 = vst [vmem:[%s292 + $0xb0] sm:$0xff] %v1765
        %1812 = vst [vmem:[%s292 + $0xb8] sm:$0xff] %v1767
        %1813 = vst [vmem:[%s292 + $0xc0] sm:$0xff] %v1770
        %1814 = vst [vmem:[%s292 + $0xc8] sm:$0xff] %v1772
        %1815 = vst [vmem:[%s292 + $0xd0] sm:$0xff] %v1775
        %1816 = vst [vmem:[%s292 + $0xd8] sm:$0xff] %v1777
        %1817 = vst [vmem:[%s292 + $0xe0] sm:$0xff] %v1780
        %1818 = vst [vmem:[%s292 + $0xe8] sm:$0xff] %v1782
        %1819 = vst [vmem:[%s292 + $0xf0] sm:$0xff] %v1785
        %1820 = vst [vmem:[%s292 + $0xf8] sm:$0xff] %v1787
        %s1821 = sand.u32 %s142, 1
        %s1822 = scalar_lea.sflag [#allocation4], %s1821
        %s1823 = sand.u32 %s142, 1
        %s1824 = smul.addr %s1823, 256
        %s1825 = scalar_lea.vmem [#allocation10], %s1824
        // Predicated region
        $region57: #{tpu_custom_call.1} parent=39 // pred_check
          %p1826 = pneg %p152
        $region58: #{tpu_custom_call.1} parent=39 // pred_check_branch
          %1828 = sbr.rel (%p1826) target = $region60
        $region59: #{tpu_custom_call.1} parent=39 // pred_region
          %s1829 = smul.u32 32, %s24
          %1831 = vsyncadd %s1822, 0
          %s1832 = smul.addr %s1829, 8
          %s1833 = scalar_lea.hbm %s5, %s1832
          %s1834 = sshll.u32 %s1825, 4
          %s1835 = int_to_ptr.vmem [resolvable:$true] %s1834
          %s1836 = sshll.u32 %s1833, 4
          %s1837 = int_to_ptr.hbm [resolvable:$true] %s1836
          %1842 = dma.vmem_to_hbm [thread:$0]  %s1835, 4096, %s1837, %s1822, 128, 128, 8
        $region60: #{tpu_custom_call.1} parent=39 // pred_fallthru
          _
      $region40: #{tpu_custom_call.1} parent=5 // pred_fallthru
        _
      %p1843 = scmp.le.s32.totalorder 2, %s19
      // Predicated region
      $region61: #{tpu_custom_call.1} parent=5 // pred_check
        %p1844 = pneg %p1843
      $region62: #{tpu_custom_call.1} parent=5 // pred_check_branch
        %1846 = sbr.rel (%p1844) target = $region64
      $region63: #{tpu_custom_call.1} parent=5 // pred_region
        %s1847 = ssub.s32 %s19, 2
        // Predicated region
        $region65: #{tpu_custom_call.1} parent=63 // pred_check
          %p1848 = pneg %p158
        $region66: #{tpu_custom_call.1} parent=63 // pred_check_branch
          %1850 = sbr.rel (%p1848) target = $region68
        $region67: #{tpu_custom_call.1} parent=63 // pred_region
          %s1851 = sand.u32 %s143, 1
          %s1852 = scalar_lea.sflag [#allocation4], %s1851
          %s1853 = sand.u32 %s143, 1
          %s1854 = smul.addr %s1853, 256
          %s1855 = scalar_lea.vmem [#allocation10], %s1854
          %1857 = dma.done %s1852, 4096
        $region68: #{tpu_custom_call.1} parent=63 // pred_fallthru
          _
      $region64: #{tpu_custom_call.1} parent=5 // pred_fallthru
        _
    $region6: #{tpu_custom_call.1} parent=1 // loop_footer
      %s23 = sadd.s32 1, %s19
    $region7: #{tpu_custom_call.1} parent=1 // loop_footer_branch
      %18 = sbr.rel target = $region3
    $region8: #{tpu_custom_call.1} parent=1 // loop_exit
      _
    %1858 = vsyncpa [#allocation3], 1
    %s1859 = scalar_lea.sflag [#allocation3], 1
    %1860 = vsyncpa %s1859, 1
    %1861 = vsyncpa [#allocation6], 1
    %1862 = vsyncpa [#allocation9], 1
    %1863 = vsyncpa [#allocation4], 1
    %s1864 = scalar_lea.sflag [#allocation4], 1
    %1865 = vsyncpa %s1864, 1

</llo_original>
